<compile_context>
chip_gen: v7x
topology: tpu7x:2x2x1
jax: 0.10.0
libtpu: 0.0.40
codegen_flags: <defaults>
</compile_context>

<pallas_src>
import functools

import jax
import jax.numpy as jnp
from jax.experimental import pallas as pl
from jax.experimental.pallas import tpu as pltpu


_LANE = 128


def _round_up(x, m):
    return (x + m - 1) // m * m


def _tpu_vmem_bytes():
    try:
        return int(pltpu.get_tpu_info().vmem_capacity_bytes)
    except Exception:
        return 64 << 20   # conservative fallback: v7x per-TensorCore VMEM


# ---------------------------------------------------------------------------
# Path A: all layer weights resident in VMEM.
# ---------------------------------------------------------------------------
def _ff_resident_kernel(x_ref, w_ref, b_ref, o_ref, *, compute_dtype):
    # x_ref: (TM, D) compute dtype; w_ref: (L, D_in, D_out) compute dtype
    # (pre-transposed + pre-cast in the wrapper); b_ref: (L, 1, D) f32.
    h = x_ref[...]
    y = None
    for l in range(w_ref.shape[0]):              # static unroll over layers
        y = jnp.dot(h, w_ref[l], preferred_element_type=jnp.float32)
        y = jnp.maximum(y + b_ref[l], 0.0)       # bias add + ReLU in f32
        h = y.astype(compute_dtype)              # next layer's MXU input
    o_ref[...] = y.astype(o_ref.dtype)


# ---------------------------------------------------------------------------
# Path B: stream one layer's weights per grid step (layer axis last).
# ---------------------------------------------------------------------------
def _ff_stream_kernel(x_ref, w_ref, b_ref, o_ref, h_ref):
    # x_ref: (TM, D); w_ref: (D_in, D_out); b_ref: (1, D) f32;
    # h_ref: (TM, D) compute-dtype scratch holding the hidden state.
    l = pl.program_id(1)
    last = pl.num_programs(1) - 1

    @pl.when(l == 0)
    def _():
        h_ref[...] = x_ref[...]

    y = jnp.dot(h_ref[...], w_ref[...], preferred_element_type=jnp.float32)
    y = jnp.maximum(y + b_ref[...], 0.0)         # bias add + ReLU in f32

    @pl.when(l < last)
    def _():
        h_ref[...] = y.astype(h_ref.dtype)

    @pl.when(l == last)
    def _():
        o_ref[...] = y.astype(o_ref.dtype)       # only the final layer stores out


def feed_forward_pallas(x2d, weights, biases, *, tile_m=None,
                        compute_dtype=jnp.bfloat16, force_stream=False):
    """x2d: (M, D); weights: (L, D, D) in PyTorch (out_features, in_features)
    layout; biases: (L, D).  Returns (M, D) in x2d.dtype."""
    M, D = x2d.shape
    L = weights.shape[0]
    out_dtype = x2d.dtype

    vmem = _tpu_vmem_bytes()
    big_vmem = vmem >= (100 << 20)          # v5e/v6e (128 MiB) vs v7x (64 MiB/TC)
    vmem_budget = int(vmem * 0.85)
    vmem_cap = int(vmem * 0.90)

    ci = jnp.dtype(compute_dtype).itemsize
    oi = jnp.dtype(out_dtype).itemsize
    m_sub = 16 if ci < 4 else 8             # sublane packing of the row tile

    # ---- pad feature dim to a lane-dense multiple of 128 (sliced off later) --
    d_pad = _round_up(D, _LANE)
    if d_pad != D:
        x2d = jnp.pad(x2d, ((0, 0), (0, d_pad - D)))
        weights = jnp.pad(weights, ((0, 0), (0, d_pad - D), (0, d_pad - D)))
        biases = jnp.pad(biases, ((0, 0), (0, d_pad - D)))

    # ---- one-time HBM-side transforms ----------------------------------------
    # Transpose to (L, D_in, D_out): standard MXU contraction, no per-tile
    # transpose.  Pre-cast weights + activations to compute dtype (bf16 halves
    # weight DMA / VMEM).  Biases stay f32 (tiny; preserves f32 bias-add).
    w_t = jnp.transpose(weights, (0, 2, 1)).astype(compute_dtype)
    b = biases.astype(jnp.float32).reshape(L, 1, d_pad)
    x_c = x2d.astype(compute_dtype)

    # ---- row tile -------------------------------------------------------------
    if tile_m is None:
        # Streaming needs a tall tile to hide each layer's (D,D) weight DMA
        # behind the MXU (~650 FLOP/byte on v6e, ~310/TC on v7x).
        tile_m = 1024 if big_vmem else 512
    if M <= tile_m:
        if M >= 512:
            tm = _round_up(-(-M // 2), _LANE)   # >=2 row tiles for v7x megacore
        else:
            tm = _round_up(M, m_sub)
    else:
        tm = _round_up(tile_m, _LANE)
    m_pad = _round_up(M, tm)
    if m_pad != M:                               # ragged M: pad, slice back later
        x_c = jnp.pad(x_c, ((0, m_pad - M), (0, 0)))
    n_row_tiles = m_pad // tm

    # ---- VMEM estimates (actual stored dtypes, explicit intermediates) --------
    tile_in = tm * d_pad * ci
    tile_out = tm * d_pad * oi
    interm = 3 * tm * d_pad * 4                  # in-kernel f32 y / h copies
    weight_bytes = L * d_pad * d_pad * ci
    bias_bytes = L * d_pad * 4
    # Resident estimate assumes single-buffered (grid-invariant) weights.
    resident_est = (weight_bytes + bias_bytes
                    + 2 * tile_in + 2 * tile_out + interm)

    out = None
    if (not force_stream) and resident_est <= vmem_budget:
        vmem_limit = min(max(int(resident_est * 1.3) + (4 << 20), 32 << 20),
                         vmem_cap)
        kernel = functools.partial(_ff_resident_kernel,
                                   compute_dtype=compute_dtype)

        def run_resident(pipeline_mode):
            wb = {} if pipeline_mode is None else dict(pipeline_mode=pipeline_mode)
            return pl.pallas_call(
                kernel,
                out_shape=jax.ShapeDtypeStruct((m_pad, d_pad), out_dtype),
                grid_spec=pltpu.PrefetchScalarGridSpec(
                    num_scalar_prefetch=0,
                    grid=(n_row_tiles,),
                    in_specs=[
                        pl.BlockSpec((tm, d_pad), lambda i: (i, 0)),       # rows
                        pl.BlockSpec((L, d_pad, d_pad),
                                     lambda i: (0, 0, 0), **wb),           # weights
                        pl.BlockSpec((L, 1, d_pad),
                                     lambda i: (0, 0, 0), **wb),           # biases
                    ],
                    out_specs=pl.BlockSpec((tm, d_pad), lambda i: (i, 0)),
                ),
                compiler_params=pltpu.CompilerParams(
                    dimension_semantics=("parallel",),
                    vmem_limit_bytes=vmem_limit,
                ),
            )(x_c, w_t, b)

        # Grid-invariant weights don't need a double buffer: try Buffered(1)
        # first, fall back to the default pipeliner, then to streaming.
        for mode in ("single_buffer", "default"):
            try:
                pm = pl.Buffered(1) if mode == "single_buffer" else None
                out = run_resident(pm)
                break
            except Exception:
                out = None

    if out is None:
        # Stream one layer's (D,D) weights per inner grid step; hidden state
        # lives in a compute-dtype VMEM scratch across the layer axis.
        stream_est = (2 * (d_pad * d_pad * ci) + 2 * bias_bytes
                      + 2 * tile_in + 2 * tile_out
                      + tm * d_pad * ci            # hidden-state scratch
                      + 2 * tm * d_pad * 4)        # in-kernel f32 y
        vmem_limit = min(max(int(stream_est * 1.3) + (4 << 20), 32 << 20),
                         vmem_cap)
        out = pl.pallas_call(
            _ff_stream_kernel,
            out_shape=jax.ShapeDtypeStruct((m_pad, d_pad), out_dtype),
            grid_spec=pltpu.PrefetchScalarGridSpec(
                num_scalar_prefetch=0,
                grid=(n_row_tiles, L),
                in_specs=[
                    pl.BlockSpec((tm, d_pad), lambda i, l: (i, 0)),          # rows
                    pl.BlockSpec((None, d_pad, d_pad), lambda i, l: (l, 0, 0)),
                    pl.BlockSpec((None, 1, d_pad), lambda i, l: (l, 0, 0)),
                ],
                out_specs=pl.BlockSpec((tm, d_pad), lambda i, l: (i, 0)),
                scratch_shapes=[pltpu.VMEM((tm, d_pad), compute_dtype)],
            ),
            compiler_params=pltpu.CompilerParams(
                dimension_semantics=("parallel", "arbitrary"),
                vmem_limit_bytes=vmem_limit,
            ),
        )(x_c, w_t, b)

    if m_pad != M:
        out = out[:M]
    if d_pad != D:
        out = out[:, :D]
    return out


def feed_forward(x, weights, biases, *, tile_m=None,
                 compute_dtype=jnp.bfloat16, force_stream=False):
    """x: (..., D). Applies L x (Linear + ReLU) exactly like the PyTorch module
    (use compute_dtype=jnp.float32 for bit-faithful f32 semantics)."""
    D = x.shape[-1]
    lead = x.shape[:-1]
    x2d = x.reshape(-1, D)
    y2d = feed_forward_pallas(x2d, weights, biases, tile_m=tile_m,
                              compute_dtype=compute_dtype,
                              force_stream=force_stream)
    return y2d.reshape(*lead, D)


def _reference(x, weights, biases):
    h = x
    for l in range(weights.shape[0]):
        h = jnp.maximum(h @ weights[l].T + biases[l], 0.0)
    return h


if __name__ == "__main__":
    dimension = 128   # feature dim (lane-aligned)
    layers = 3
    batch, seq = 2, 8  # M = batch*seq = 16

    key = jax.random.PRNGKey(0)
    kx, kw, kb, kx2 = jax.random.split(key, 4)

    # Deterministic synthetic parameters (PyTorch Linear weight shape: (out, in))
    bound = 1.0 / (dimension ** 0.5)
    weights = jax.random.uniform(
        kw, (layers, dimension, dimension), jnp.float32, -bound, bound)
    biases = jax.random.uniform(
        kb, (layers, dimension), jnp.float32, -bound, bound)
    x = jax.random.normal(kx, (batch, seq, dimension), jnp.float32)
    ref = _reference(x.reshape(-1, dimension), weights, biases).reshape(x.shape)

    # 1) Exact f32 semantics (resident weights path), tight tolerance.
    out_f32 = jax.block_until_ready(
        feed_forward(x, weights, biases, compute_dtype=jnp.float32))
    assert out_f32.shape == (batch, seq, dimension)
    assert jnp.allclose(out_f32, ref, atol=1e-4, rtol=1e-4), "f32 path mismatch"

    # 2) Default bf16-compute path (f32 accumulate) — relaxed tolerance.
    out_bf16 = jax.block_until_ready(feed_forward(x, weights, biases))
    assert jnp.allclose(out_bf16, ref, atol=5e-2, rtol=5e-2), "bf16 path mismatch"

    # 3) Streaming path with ragged M (padding rows), exact f32 semantics.
    x2 = jax.random.normal(kx2, (3, 5, dimension), jnp.float32)
    ref2 = _reference(x2.reshape(-1, dimension), weights, biases).reshape(x2.shape)
    out_s = jax.block_until_ready(
        feed_forward(x2, weights, biases, compute_dtype=jnp.float32,
                     force_stream=True))
    assert jnp.allclose(out_s, ref2, atol=1e-4, rtol=1e-4), "stream path mismatch"

    # 4) Non-128 feature dim exercises lane padding (D=96 -> 128).
    d2, l2 = 96, 2
    b2d = 1.0 / (d2 ** 0.5)
    w2 = jax.random.uniform(kw, (l2, d2, d2), jnp.float32, -b2d, b2d)
    b2 = jax.random.uniform(kb, (l2, d2), jnp.float32, -b2d, b2d)
    x3 = jax.random.normal(kx, (4, d2), jnp.float32)
    ref3 = _reference(x3, w2, b2)
    out3 = jax.block_until_ready(
        feed_forward(x3, w2, b2, compute_dtype=jnp.float32))
    assert jnp.allclose(out3, ref3, atol=1e-4, rtol=1e-4), "D-padding mismatch"

    print("KERNEL_OK")
</pallas_src>

<mosaic_0001>
module attributes {stable_mosaic.version = 11 : i64} {
  func.func @_ff_resident_kernel(%arg0: i32, %arg1: memref<16x128xf32, #tpu.memory_space<vmem>>, %arg2: memref<3x128x128xf32, #tpu.memory_space<vmem>>, %arg3: memref<3x1x128xf32, #tpu.memory_space<vmem>>, %arg4: memref<16x128xf32, #tpu.memory_space<vmem>>) attributes {dimension_semantics = [#tpu.dimension_semantics<parallel>], iteration_bounds = array<i64: 1>, scalar_prefetch = 0 : i64, scratch_operands = 0 : i64, tpu.core_type = #tpu.core_type<tc>, window_params = [{transform_indices = @transform_0, window_bounds = array<i64: 16, 128>}, {pipeline_mode = #tpu.pipeline_mode<synchronous>, transform_indices = @transform_1, window_bounds = array<i64: 3, 128, 128>}, {pipeline_mode = #tpu.pipeline_mode<synchronous>, transform_indices = @transform_2, window_bounds = array<i64: 3, 1, 128>}, {transform_indices = @transform_3, window_bounds = array<i64: 16, 128>}]} {
    %c0 = arith.constant 0 : index
    %c0_0 = arith.constant 0 : index
    %0 = vector.load %arg1[%c0, %c0_0] : memref<16x128xf32, #tpu.memory_space<vmem>>, vector<16x128xf32>
    %c0_1 = arith.constant 0 : index
    %c0_2 = arith.constant 0 : index
    %c0_3 = arith.constant 0 : index
    %1 = vector.load %arg2[%c0_1, %c0_2, %c0_3] : memref<3x128x128xf32, #tpu.memory_space<vmem>>, vector<1x128x128xf32>
    %2 = vector.shape_cast %1 : vector<1x128x128xf32> to vector<128x128xf32>
    %cst = arith.constant dense<0.000000e+00> : vector<16x128xf32>
    %3 = tpu.matmul %0, %2, %cst {dimension_numbers = #tpu.dot_dimension_numbers<[1], [0], [0], [1], [0, 0, 1, 1], [], []>} : vector<16x128xf32>, vector<128x128xf32>, vector<16x128xf32> -> vector<16x128xf32>
    %c0_4 = arith.constant 0 : index
    %c0_5 = arith.constant 0 : index
    %c0_6 = arith.constant 0 : index
    %4 = vector.load %arg3[%c0_4, %c0_5, %c0_6] : memref<3x1x128xf32, #tpu.memory_space<vmem>>, vector<1x1x128xf32>
    %5 = vector.shape_cast %4 : vector<1x1x128xf32> to vector<1x128xf32>
    %6 = vector.broadcast %5 : vector<1x128xf32> to vector<16x128xf32>
    %7 = arith.addf %3, %6 : vector<16x128xf32>
    %cst_7 = arith.constant 0.000000e+00 : f32
    %8 = vector.broadcast %cst_7 : f32 to vector<16x128xf32>
    %9 = arith.maximumf %7, %8 : vector<16x128xf32>
    %c1 = arith.constant 1 : index
    %c0_8 = arith.constant 0 : index
    %c0_9 = arith.constant 0 : index
    %10 = vector.load %arg2[%c1, %c0_8, %c0_9] : memref<3x128x128xf32, #tpu.memory_space<vmem>>, vector<1x128x128xf32>
    %11 = vector.shape_cast %10 : vector<1x128x128xf32> to vector<128x128xf32>
    %cst_10 = arith.constant dense<0.000000e+00> : vector<16x128xf32>
    %12 = tpu.matmul %9, %11, %cst_10 {dimension_numbers = #tpu.dot_dimension_numbers<[1], [0], [0], [1], [0, 0, 1, 1], [], []>} : vector<16x128xf32>, vector<128x128xf32>, vector<16x128xf32> -> vector<16x128xf32>
    %c1_11 = arith.constant 1 : index
    %c0_12 = arith.constant 0 : index
    %c0_13 = arith.constant 0 : index
    %13 = vector.load %arg3[%c1_11, %c0_12, %c0_13] : memref<3x1x128xf32, #tpu.memory_space<vmem>>, vector<1x1x128xf32>
    %14 = vector.shape_cast %13 : vector<1x1x128xf32> to vector<1x128xf32>
    %15 = vector.broadcast %14 : vector<1x128xf32> to vector<16x128xf32>
    %16 = arith.addf %12, %15 : vector<16x128xf32>
    %cst_14 = arith.constant 0.000000e+00 : f32
    %17 = vector.broadcast %cst_14 : f32 to vector<16x128xf32>
    %18 = arith.maximumf %16, %17 : vector<16x128xf32>
    %c2 = arith.constant 2 : index
    %c0_15 = arith.constant 0 : index
    %c0_16 = arith.constant 0 : index
    %19 = vector.load %arg2[%c2, %c0_15, %c0_16] : memref<3x128x128xf32, #tpu.memory_space<vmem>>, vector<1x128x128xf32>
    %20 = vector.shape_cast %19 : vector<1x128x128xf32> to vector<128x128xf32>
    %cst_17 = arith.constant dense<0.000000e+00> : vector<16x128xf32>
    %21 = tpu.matmul %18, %20, %cst_17 {dimension_numbers = #tpu.dot_dimension_numbers<[1], [0], [0], [1], [0, 0, 1, 1], [], []>} : vector<16x128xf32>, vector<128x128xf32>, vector<16x128xf32> -> vector<16x128xf32>
    %c2_18 = arith.constant 2 : index
    %c0_19 = arith.constant 0 : index
    %c0_20 = arith.constant 0 : index
    %22 = vector.load %arg3[%c2_18, %c0_19, %c0_20] : memref<3x1x128xf32, #tpu.memory_space<vmem>>, vector<1x1x128xf32>
    %23 = vector.shape_cast %22 : vector<1x1x128xf32> to vector<1x128xf32>
    %24 = vector.broadcast %23 : vector<1x128xf32> to vector<16x128xf32>
    %25 = arith.addf %21, %24 : vector<16x128xf32>
    %cst_21 = arith.constant 0.000000e+00 : f32
    %26 = vector.broadcast %cst_21 : f32 to vector<16x128xf32>
    %27 = arith.maximumf %25, %26 : vector<16x128xf32>
    %c0_22 = arith.constant 0 : index
    %c0_23 = arith.constant 0 : index
    %28 = vector.load %arg4[%c0_22, %c0_23] : memref<16x128xf32, #tpu.memory_space<vmem>>, vector<16x128xf32>
    tpu.vector_store %arg4[%c0_22, %c0_23], %27 {strides = array<i32>} : memref<16x128xf32, #tpu.memory_space<vmem>>, vector<16x128xf32>,
    return
  }
  func.func @transform_0(%arg0: i32) -> (i32, i32) {
    %c0_i32 = arith.constant 0 : i32
    %c0_i32_0 = arith.constant 0 : i32
    return %arg0, %c0_i32 : i32, i32
  }
  func.func @transform_1(%arg0: i32) -> (i32, i32, i32) {
    %c0_i32 = arith.constant 0 : i32
    %c0_i32_0 = arith.constant 0 : i32
    %c0_i32_1 = arith.constant 0 : i32
    %c0_i32_2 = arith.constant 0 : i32
    return %c0_i32, %c0_i32_0, %c0_i32_1 : i32, i32, i32
  }
  func.func @transform_2(%arg0: i32) -> (i32, i32, i32) {
    %c0_i32 = arith.constant 0 : i32
    %c0_i32_0 = arith.constant 0 : i32
    %c0_i32_1 = arith.constant 0 : i32
    %c0_i32_2 = arith.constant 0 : i32
    return %c0_i32, %c0_i32_0, %c0_i32_1 : i32, i32, i32
  }
  func.func @transform_3(%arg0: i32) -> (i32, i32) {
    %c0_i32 = arith.constant 0 : i32
    %c0_i32_0 = arith.constant 0 : i32
    return %arg0, %c0_i32 : i32, i32
  }
}

module attributes {stable_mosaic.version = 11 : i64} {
  func.func @_ff_resident_kernel(%arg0: i32, %arg1: memref<16x128xf32, #tpu.memory_space<vmem>>, %arg2: memref<3x128x128xf32, #tpu.memory_space<vmem>>, %arg3: memref<3x1x128xf32, #tpu.memory_space<vmem>>, %arg4: memref<16x128xf32, #tpu.memory_space<vmem>>) attributes {dimension_semantics = [#tpu.dimension_semantics<parallel>], iteration_bounds = array<i64: 1>, scalar_prefetch = 0 : i64, scratch_operands = 0 : i64, tpu.core_type = #tpu.core_type<tc>, window_params = [{transform_indices = @transform_0, window_bounds = array<i64: 16, 128>}, {pipeline_mode = #tpu.pipeline_mode<synchronous>, transform_indices = @transform_1, window_bounds = array<i64: 3, 128, 128>}, {pipeline_mode = #tpu.pipeline_mode<synchronous>, transform_indices = @transform_2, window_bounds = array<i64: 3, 1, 128>}, {transform_indices = @transform_3, window_bounds = array<i64: 16, 128>}]} {
    %c0 = arith.constant 0 : index
    %c0_0 = arith.constant 0 : index
    %0 = vector.load %arg1[%c0, %c0_0] : memref<16x128xf32, #tpu.memory_space<vmem>>, vector<16x128xf32>
    %c0_1 = arith.constant 0 : index
    %c0_2 = arith.constant 0 : index
    %c0_3 = arith.constant 0 : index
    %1 = vector.load %arg2[%c0_1, %c0_2, %c0_3] : memref<3x128x128xf32, #tpu.memory_space<vmem>>, vector<1x128x128xf32>
    %2 = vector.shape_cast %1 : vector<1x128x128xf32> to vector<128x128xf32>
    %cst = arith.constant dense<0.000000e+00> : vector<16x128xf32>
    %3 = tpu.matmul %0, %2, %cst {dimension_numbers = #tpu.dot_dimension_numbers<[1], [0], [0], [1], [0, 0, 1, 1], [], []>} : vector<16x128xf32>, vector<128x128xf32>, vector<16x128xf32> -> vector<16x128xf32>
    %c0_4 = arith.constant 0 : index
    %c0_5 = arith.constant 0 : index
    %c0_6 = arith.constant 0 : index
    %4 = vector.load %arg3[%c0_4, %c0_5, %c0_6] : memref<3x1x128xf32, #tpu.memory_space<vmem>>, vector<1x1x128xf32>
    %5 = vector.shape_cast %4 : vector<1x1x128xf32> to vector<1x128xf32>
    %6 = vector.broadcast %5 : vector<1x128xf32> to vector<16x128xf32>
    %7 = arith.addf %3, %6 : vector<16x128xf32>
    %cst_7 = arith.constant 0.000000e+00 : f32
    %8 = vector.broadcast %cst_7 : f32 to vector<16x128xf32>
    %9 = arith.maximumf %7, %8 : vector<16x128xf32>
    %c1 = arith.constant 1 : index
    %c0_8 = arith.constant 0 : index
    %c0_9 = arith.constant 0 : index
    %10 = vector.load %arg2[%c1, %c0_8, %c0_9] : memref<3x128x128xf32, #tpu.memory_space<vmem>>, vector<1x128x128xf32>
    %11 = vector.shape_cast %10 : vector<1x128x128xf32> to vector<128x128xf32>
    %cst_10 = arith.constant dense<0.000000e+00> : vector<16x128xf32>
    %12 = tpu.matmul %9, %11, %cst_10 {dimension_numbers = #tpu.dot_dimension_numbers<[1], [0], [0], [1], [0, 0, 1, 1], [], []>} : vector<16x128xf32>, vector<128x128xf32>, vector<16x128xf32> -> vector<16x128xf32>
    %c1_11 = arith.constant 1 : index
    %c0_12 = arith.constant 0 : index
    %c0_13 = arith.constant 0 : index
    %13 = vector.load %arg3[%c1_11, %c0_12, %c0_13] : memref<3x1x128xf32, #tpu.memory_space<vmem>>, vector<1x1x128xf32>
    %14 = vector.shape_cast %13 : vector<1x1x128xf32> to vector<1x128xf32>
    %15 = vector.broadcast %14 : vector<1x128xf32> to vector<16x128xf32>
    %16 = arith.addf %12, %15 : vector<16x128xf32>
    %cst_14 = arith.constant 0.000000e+00 : f32
    %17 = vector.broadcast %cst_14 : f32 to vector<16x128xf32>
    %18 = arith.maximumf %16, %17 : vector<16x128xf32>
    %c2 = arith.constant 2 : index
    %c0_15 = arith.constant 0 : index
    %c0_16 = arith.constant 0 : index
    %19 = vector.load %arg2[%c2, %c0_15, %c0_16] : memref<3x128x128xf32, #tpu.memory_space<vmem>>, vector<1x128x128xf32>
    %20 = vector.shape_cast %19 : vector<1x128x128xf32> to vector<128x128xf32>
    %cst_17 = arith.constant dense<0.000000e+00> : vector<16x128xf32>
    %21 = tpu.matmul %18, %20, %cst_17 {dimension_numbers = #tpu.dot_dimension_numbers<[1], [0], [0], [1], [0, 0, 1, 1], [], []>} : vector<16x128xf32>, vector<128x128xf32>, vector<16x128xf32> -> vector<16x128xf32>
    %c2_18 = arith.constant 2 : index
    %c0_19 = arith.constant 0 : index
    %c0_20 = arith.constant 0 : index
    %22 = vector.load %arg3[%c2_18, %c0_19, %c0_20] : memref<3x1x128xf32, #tpu.memory_space<vmem>>, vector<1x1x128xf32>
    %23 = vector.shape_cast %22 : vector<1x1x128xf32> to vector<1x128xf32>
    %24 = vector.broadcast %23 : vector<1x128xf32> to vector<16x128xf32>
    %25 = arith.addf %21, %24 : vector<16x128xf32>
    %cst_21 = arith.constant 0.000000e+00 : f32
    %26 = vector.broadcast %cst_21 : f32 to vector<16x128xf32>
    %27 = arith.maximumf %25, %26 : vector<16x128xf32>
    %c0_22 = arith.constant 0 : index
    %c0_23 = arith.constant 0 : index
    %28 = vector.load %arg4[%c0_22, %c0_23] : memref<16x128xf32, #tpu.memory_space<vmem>>, vector<16x128xf32>
    tpu.vector_store %arg4[%c0_22, %c0_23], %27 {strides = array<i32>} : memref<16x128xf32, #tpu.memory_space<vmem>>, vector<16x128xf32>,
    return
  }
  func.func @transform_0(%arg0: i32) -> (i32, i32) {
    %c0_i32 = arith.constant 0 : i32
    %c0_i32_0 = arith.constant 0 : i32
    return %arg0, %c0_i32 : i32, i32
  }
  func.func @transform_1(%arg0: i32) -> (i32, i32, i32) {
    %c0_i32 = arith.constant 0 : i32
    %c0_i32_0 = arith.constant 0 : i32
    %c0_i32_1 = arith.constant 0 : i32
    %c0_i32_2 = arith.constant 0 : i32
    return %c0_i32, %c0_i32_0, %c0_i32_1 : i32, i32, i32
  }
  func.func @transform_2(%arg0: i32) -> (i32, i32, i32) {
    %c0_i32 = arith.constant 0 : i32
    %c0_i32_0 = arith.constant 0 : i32
    %c0_i32_1 = arith.constant 0 : i32
    %c0_i32_2 = arith.constant 0 : i32
    return %c0_i32, %c0_i32_0, %c0_i32_1 : i32, i32, i32
  }
  func.func @transform_3(%arg0: i32) -> (i32, i32) {
    %c0_i32 = arith.constant 0 : i32
    %c0_i32_0 = arith.constant 0 : i32
    return %arg0, %c0_i32 : i32, i32
  }
}

module attributes {stable_mosaic.version = 11 : i64} {
  func.func @_ff_stream_kernel(%arg0: i32, %arg1: i32, %arg2: memref<16x128xf32, #tpu.memory_space<vmem>>, %arg3: memref<1x128x128xf32, #tpu.memory_space<vmem>>, %arg4: memref<1x1x128xf32, #tpu.memory_space<vmem>>, %arg5: memref<16x128xf32, #tpu.memory_space<vmem>>, %arg6: memref<16x128xf32, #tpu.memory_space<vmem>>) attributes {dimension_semantics = [#tpu.dimension_semantics<parallel>, #tpu.dimension_semantics<arbitrary>], iteration_bounds = array<i64: 1, 3>, scalar_prefetch = 0 : i64, scratch_operands = 1 : i64, tpu.core_type = #tpu.core_type<tc>, window_params = [{transform_indices = @transform_0, window_bounds = array<i64: 16, 128>}, {transform_indices = @transform_1, window_bounds = array<i64: 1, 128, 128>}, {transform_indices = @transform_2, window_bounds = array<i64: 1, 1, 128>}, {transform_indices = @transform_3, window_bounds = array<i64: 16, 128>}]} {
    %c0_i32 = arith.constant 0 : i32
    %0 = arith.cmpi eq, %arg1, %c0_i32 : i32
    %1 = arith.extui %0 : i1 to i32
    %c0_i32_0 = arith.constant 0 : i32
    %2 = arith.cmpi ne, %1, %c0_i32_0 : i32
    scf.if %2 {
      %c0_12 = arith.constant 0 : index
      %c0_13 = arith.constant 0 : index
      %19 = vector.load %arg2[%c0_12, %c0_13] : memref<16x128xf32, #tpu.memory_space<vmem>>, vector<16x128xf32>
      %c0_14 = arith.constant 0 : index
      %c0_15 = arith.constant 0 : index
      %20 = vector.load %arg6[%c0_14, %c0_15] : memref<16x128xf32, #tpu.memory_space<vmem>>, vector<16x128xf32>
      tpu.vector_store %arg6[%c0_14, %c0_15], %19 {strides = array<i32>} : memref<16x128xf32, #tpu.memory_space<vmem>>, vector<16x128xf32>,
    } else {
    }
    %c0 = arith.constant 0 : index
    %c0_1 = arith.constant 0 : index
    %3 = vector.load %arg6[%c0, %c0_1] : memref<16x128xf32, #tpu.memory_space<vmem>>, vector<16x128xf32>
    %c0_2 = arith.constant 0 : index
    %c0_3 = arith.constant 0 : index
    %c0_4 = arith.constant 0 : index
    %4 = vector.load %arg3[%c0_2, %c0_3, %c0_4] : memref<1x128x128xf32, #tpu.memory_space<vmem>>, vector<1x128x128xf32>
    %5 = vector.shape_cast %4 : vector<1x128x128xf32> to vector<128x128xf32>
    %cst = arith.constant dense<0.000000e+00> : vector<16x128xf32>
    %6 = tpu.matmul %3, %5, %cst {dimension_numbers = #tpu.dot_dimension_numbers<[1], [0], [0], [1], [0, 0, 1, 1], [], []>} : vector<16x128xf32>, vector<128x128xf32>, vector<16x128xf32> -> vector<16x128xf32>
    %c0_5 = arith.constant 0 : index
    %c0_6 = arith.constant 0 : index
    %c0_7 = arith.constant 0 : index
    %7 = vector.load %arg4[%c0_5, %c0_6, %c0_7] : memref<1x1x128xf32, #tpu.memory_space<vmem>>, vector<1x1x128xf32>
    %8 = vector.shape_cast %7 : vector<1x1x128xf32> to vector<1x128xf32>
    %9 = vector.broadcast %8 : vector<1x128xf32> to vector<16x128xf32>
    %10 = arith.addf %6, %9 : vector<16x128xf32>
    %cst_8 = arith.constant 0.000000e+00 : f32
    %11 = vector.broadcast %cst_8 : f32 to vector<16x128xf32>
    %12 = arith.maximumf %10, %11 : vector<16x128xf32>
    %c2_i32 = arith.constant 2 : i32
    %13 = arith.cmpi slt, %arg1, %c2_i32 : i32
    %14 = arith.extui %13 : i1 to i32
    %c0_i32_9 = arith.constant 0 : i32
    %15 = arith.cmpi ne, %14, %c0_i32_9 : i32
    scf.if %15 {
      %c0_12 = arith.constant 0 : index
      %c0_13 = arith.constant 0 : index
      %19 = vector.load %arg6[%c0_12, %c0_13] : memref<16x128xf32, #tpu.memory_space<vmem>>, vector<16x128xf32>
      tpu.vector_store %arg6[%c0_12, %c0_13], %12 {strides = array<i32>} : memref<16x128xf32, #tpu.memory_space<vmem>>, vector<16x128xf32>,
    } else {
    }
    %c2_i32_10 = arith.constant 2 : i32
    %16 = arith.cmpi eq, %arg1, %c2_i32_10 : i32
    %17 = arith.extui %16 : i1 to i32
    %c0_i32_11 = arith.constant 0 : i32
    %18 = arith.cmpi ne, %17, %c0_i32_11 : i32
    scf.if %18 {
      %c0_12 = arith.constant 0 : index
      %c0_13 = arith.constant 0 : index
      %19 = vector.load %arg5[%c0_12, %c0_13] : memref<16x128xf32, #tpu.memory_space<vmem>>, vector<16x128xf32>
      tpu.vector_store %arg5[%c0_12, %c0_13], %12 {strides = array<i32>} : memref<16x128xf32, #tpu.memory_space<vmem>>, vector<16x128xf32>,
    } else {
    }
    return
  }
  func.func @transform_0(%arg0: i32, %arg1: i32) -> (i32, i32) {
    %c0_i32 = arith.constant 0 : i32
    %c0_i32_0 = arith.constant 0 : i32
    return %arg0, %c0_i32 : i32, i32
  }
  func.func @transform_1(%arg0: i32, %arg1: i32) -> (i32, i32, i32) {
    %c0_i32 = arith.constant 0 : i32
    %c0_i32_0 = arith.constant 0 : i32
    %c0_i32_1 = arith.constant 0 : i32
    return %arg1, %c0_i32, %c0_i32_0 : i32, i32, i32
  }
  func.func @transform_2(%arg0: i32, %arg1: i32) -> (i32, i32, i32) {
    %c0_i32 = arith.constant 0 : i32
    %c0_i32_0 = arith.constant 0 : i32
    %c0_i32_1 = arith.constant 0 : i32
    return %arg1, %c0_i32, %c0_i32_0 : i32, i32, i32
  }
  func.func @transform_3(%arg0: i32, %arg1: i32) -> (i32, i32) {
    %c0_i32 = arith.constant 0 : i32
    %c0_i32_0 = arith.constant 0 : i32
    return %arg0, %c0_i32 : i32, i32
  }
}

</mosaic_0001>

<llo_original>
// kernel: tpu_custom_call.1
$region0: #{tpu_custom_call.1}
  #allocation0 [shape = 'u32[]', space=smem, size = 0x4, offset = 0x4, fixed_abs, tag = 'smem constant byte address 0x4 - core index']
  #allocation1 [shape = 'u32[144,128]{1,0:T(1,128)}', space=vmem, size = 0x12000, scoped, tag = 'internal scratch']
  %s0 = inlined_call_operand.hbm [shape: f32[16,128], index: 0, kind: input, shape index: {}]
  %s1 = inlined_call_operand.hbm [shape: f32[3,128,128], index: 1, kind: input, shape index: {}]
  %s2 = inlined_call_operand.vmem [shape: f32[3,1,128], index: 2, kind: input, shape index: {}]
  %s3 = inlined_call_operand.hbm [shape: f32[16,128], index: 3, kind: output, shape index: {}]
  %s4 = sld [smem:[#allocation0]]
  $region30: #{tpu_custom_call.1} parent=0
    _
  %s6 = ssub.s32 1, %s4
  %s7 = scalar_select 0, %s6, %s4
  $region1: #{tpu_custom_call.1} parent=0
    #allocation2 [shape = 'u8[8192]{0}', space=vmem, size = 0x2000, scoped, tag = 'input window, operand 0, single buffered']
    #allocation3 [shape = 's32[1]{0}', space=sflag, size = 0x4, scoped, tag = 'scoped memory for tpu_custom_call.1']
    #allocation4 [shape = 's32[1]{0}', space=sflag, size = 0x4, scoped, tag = 'scoped memory for tpu_custom_call.1']
    #allocation5 [shape = 'u8[196608]{0}', space=vmem, size = 0x30000, scoped, tag = 'input window, operand 1, single buffered']
    #allocation6 [shape = 's32[1]{0}', space=sflag, size = 0x4, scoped, tag = 'scoped memory for tpu_custom_call.1']
    #allocation7 [shape = 'u8[8192]{0}', space=vmem, size = 0x2000, scoped, tag = 'output window, operand 0, single buffered']
    %8 = vsyncpa [#allocation3], 0
    %9 = vsyncpa [#allocation6], 0
    %10 = vsyncpa [#allocation4], 0
    // Predicated region
    $region2: #{tpu_custom_call.1} parent=1 // pred_check
      _
    $region3: #{tpu_custom_call.1} parent=1 // pred_check_branch
      %12 = sbr.rel (0) target = $region5
    $region4: #{tpu_custom_call.1} parent=1 // pred_region
      %s14 = ssub.s32 256, 256
      %15 = vsyncadd [#allocation3], %s14
      %s16 = sshll.u32 [#allocation2], 4
      %s17 = int_to_ptr.vmem [resolvable:$true] %s16
      %22 = dma.hbm_to_vmem [thread:$0]  %s0, 256, %s17, [#allocation3], 128, 128, 8
    $region5: #{tpu_custom_call.1} parent=1 // pred_fallthru
      _
    // Predicated region
    $region6: #{tpu_custom_call.1} parent=1 // pred_check
      _
    $region7: #{tpu_custom_call.1} parent=1 // pred_check_branch
      %24 = sbr.rel (0) target = $region9
    $region8: #{tpu_custom_call.1} parent=1 // pred_region
      %s26 = ssub.s32 6144, 6144
      %27 = vsyncadd [#allocation6], %s26
      %s28 = sshll.u32 [#allocation5], 4
      %s29 = int_to_ptr.vmem [resolvable:$true] %s28
      %34 = dma.hbm_to_vmem [thread:$0]  %s1, 6144, %s29, [#allocation6], 128, 128, 8
    $region9: #{tpu_custom_call.1} parent=1 // pred_fallthru
      _
    // Predicated region
    $region10: #{tpu_custom_call.1} parent=1 // pred_check
      _
    $region11: #{tpu_custom_call.1} parent=1 // pred_check_branch
      %36 = sbr.rel (0) target = $region13
    $region12: #{tpu_custom_call.1} parent=1 // pred_region
      _
    $region13: #{tpu_custom_call.1} parent=1 // pred_fallthru
      _
    // Predicated region
    $region14: #{tpu_custom_call.1} parent=1 // pred_check
      _
    $region15: #{tpu_custom_call.1} parent=1 // pred_check_branch
      %38 = sbr.rel (0) target = $region17
    $region16: #{tpu_custom_call.1} parent=1 // pred_region
      %39 = dma.done [#allocation3], 256
    $region17: #{tpu_custom_call.1} parent=1 // pred_fallthru
      _
    // Predicated region
    $region18: #{tpu_custom_call.1} parent=1 // pred_check
      _
    $region19: #{tpu_custom_call.1} parent=1 // pred_check_branch
      %41 = sbr.rel (0) target = $region21
    $region20: #{tpu_custom_call.1} parent=1 // pred_region
      %42 = dma.done [#allocation6], 6144
    $region21: #{tpu_custom_call.1} parent=1 // pred_fallthru
      _
    %v43 = vld [vmem:[#allocation2] sm:$0xff]
    %v44 = vld [vmem:[#allocation2 + $0x8] sm:$0xff]
    %v45 = vld [vmem:[#allocation5] sm:$0xff]
    %v46 = vld [vmem:[#allocation5 + $0x8] sm:$0xff]
    %v47 = vld [vmem:[#allocation5 + $0x10] sm:$0xff]
    %v48 = vld [vmem:[#allocation5 + $0x18] sm:$0xff]
    %v49 = vld [vmem:[#allocation5 + $0x20] sm:$0xff]
    %v50 = vld [vmem:[#allocation5 + $0x28] sm:$0xff]
    %v51 = vld [vmem:[#allocation5 + $0x30] sm:$0xff]
    %v52 = vld [vmem:[#allocation5 + $0x38] sm:$0xff]
    %v53 = vld [vmem:[#allocation5 + $0x40] sm:$0xff]
    %v54 = vld [vmem:[#allocation5 + $0x48] sm:$0xff]
    %v55 = vld [vmem:[#allocation5 + $0x50] sm:$0xff]
    %v56 = vld [vmem:[#allocation5 + $0x58] sm:$0xff]
    %v57 = vld [vmem:[#allocation5 + $0x60] sm:$0xff]
    %v58 = vld [vmem:[#allocation5 + $0x68] sm:$0xff]
    %v59 = vld [vmem:[#allocation5 + $0x70] sm:$0xff]
    %v60 = vld [vmem:[#allocation5 + $0x78] sm:$0xff]
    %v61 = vld [vmem:[%s2] sm:$0x1]
    %v63 = vlaneseq
    %v64 = vshrl.u32 %v63, 7
    %v65 = vsub.s32 0, %v64
    %v66 = vrot.slane %v61, %v65
    %68 = vmatprep.subr.mxu0 0.0
    %69 = vmatpush1.msra.mxu0 %v45
    %70 = vmatprep.subr.mxu0 0.0
    %71 = vmatpush1.msra.mxu0 %v46
    %72 = vmatprep.subr.mxu0 0.0
    %73 = vmatpush1.msra.mxu0 %v47
    %74 = vmatprep.subr.mxu0 0.0
    %75 = vmatpush1.msra.mxu0 %v48
    %76 = vmatprep.subr.mxu0 0.0
    %77 = vmatpush1.msra.mxu0 %v49
    %78 = vmatprep.subr.mxu0 0.0
    %79 = vmatpush1.msra.mxu0 %v50
    %80 = vmatprep.subr.mxu0 0.0
    %81 = vmatpush1.msra.mxu0 %v51
    %82 = vmatprep.subr.mxu0 0.0
    %83 = vmatpush1.msra.mxu0 %v52
    %84 = vmatprep.subr.mxu0 0.0
    %85 = vmatpush1.msra.mxu0 %v53
    %86 = vmatprep.subr.mxu0 0.0
    %87 = vmatpush1.msra.mxu0 %v54
    %88 = vmatprep.subr.mxu0 0.0
    %89 = vmatpush1.msra.mxu0 %v55
    %90 = vmatprep.subr.mxu0 0.0
    %91 = vmatpush1.msra.mxu0 %v56
    %92 = vmatprep.subr.mxu0 0.0
    %93 = vmatpush1.msra.mxu0 %v57
    %94 = vmatprep.subr.mxu0 0.0
    %95 = vmatpush1.msra.mxu0 %v58
    %96 = vmatprep.subr.mxu0 0.0
    %97 = vmatpush1.msra.mxu0 %v59
    %98 = vmatprep.subr.mxu0 0.0
    %99 = vmatpush1.msra.mxu0 %v60
    %100 = vmatprep.subr.mxu0 0.0
    %101 = vmatpush1.msra.mxu0 0.0
    %102 = vmatprep.subr.mxu0 0.0
    %103 = vmatpush1.msra.mxu0 0.0
    %104 = vmatprep.subr.mxu0 0.0
    %105 = vmatpush1.msra.mxu0 0.0
    %106 = vmatprep.subr.mxu0 0.0
    %107 = vmatpush1.msra.mxu0 0.0
    %108 = vmatprep.subr.mxu0 0.0
    %109 = vmatpush1.msra.mxu0 0.0
    %110 = vmatprep.subr.mxu0 0.0
    %111 = vmatpush1.msra.mxu0 0.0
    %112 = vmatprep.subr.mxu0 0.0
    %113 = vmatpush1.msra.mxu0 0.0
    %114 = vmatprep.subr.mxu0 0.0
    %115 = vmatpush1.msra.mxu0 0.0
    %116 = vmatprep.subr.mxu0 0.0
    %117 = vmatpush1.msra.mxu0 0.0
    %118 = vmatprep.subr.mxu0 0.0
    %119 = vmatpush1.msra.mxu0 0.0
    %120 = vmatprep.subr.mxu0 0.0
    %121 = vmatpush1.msra.mxu0 0.0
    %122 = vmatprep.subr.mxu0 0.0
    %123 = vmatpush1.msra.mxu0 0.0
    %124 = vmatprep.subr.mxu0 0.0
    %125 = vmatpush1.msra.mxu0 0.0
    %126 = vmatprep.subr.mxu0 0.0
    %127 = vmatpush1.msra.mxu0 0.0
    %128 = vmatprep.subr.mxu0 0.0
    %129 = vmatpush1.msra.mxu0 0.0
    %130 = vmatprep.subr.mxu0 0.0
    %131 = vmatpush1.msra.mxu0 0.0
    %132 = vmatprep.mubr.f32.mxu0 0.0
    %133 = vmatmul.mubr.f32.gmra.mrb[0].mxu0 %v43
    %v134 = vpop.f32.mrb[0].mxu0
    %v135 = vadd.f32 %v66, %v134
    %v136 = vpop.f32.mrb[0].mxu0
    %137 = vmatprep.mubr.f32.mxu0 0.0
    %138 = vmatmul.mubr.f32.gmra.mrb[0].mxu0 %v44
    %v139 = vpop.f32.mrb[0].mxu0
    %v140 = vadd.f32 %v66, %v139
    %v141 = vpop.f32.mrb[0].mxu0
    %142 = vdwg.mxu0
    %v143 = vmax.f32 %v135, 0.0
    %v144 = vmax.f32 %v140, 0.0
    %s145 = scalar_lea.vmem [#allocation5], 128
    %v146 = vld [vmem:[%s145] sm:$0xff]
    %v147 = vld [vmem:[%s145 + $0x8] sm:$0xff]
    %v148 = vld [vmem:[%s145 + $0x10] sm:$0xff]
    %v149 = vld [vmem:[%s145 + $0x18] sm:$0xff]
    %v150 = vld [vmem:[%s145 + $0x20] sm:$0xff]
    %v151 = vld [vmem:[%s145 + $0x28] sm:$0xff]
    %v152 = vld [vmem:[%s145 + $0x30] sm:$0xff]
    %v153 = vld [vmem:[%s145 + $0x38] sm:$0xff]
    %v154 = vld [vmem:[%s145 + $0x40] sm:$0xff]
    %v155 = vld [vmem:[%s145 + $0x48] sm:$0xff]
    %v156 = vld [vmem:[%s145 + $0x50] sm:$0xff]
    %v157 = vld [vmem:[%s145 + $0x58] sm:$0xff]
    %v158 = vld [vmem:[%s145 + $0x60] sm:$0xff]
    %v159 = vld [vmem:[%s145 + $0x68] sm:$0xff]
    %v160 = vld [vmem:[%s145 + $0x70] sm:$0xff]
    %v161 = vld [vmem:[%s145 + $0x78] sm:$0xff]
    %s162 = scalar_lea.vmem %s2, 1
    %v163 = vld [vmem:[%s162] sm:$0x1]
    %v165 = vlaneseq
    %v166 = vshrl.u32 %v165, 7
    %v167 = vsub.s32 0, %v166
    %v168 = vrot.slane %v163, %v167
    %170 = vmatprep.subr.mxu0 0.0
    %171 = vmatpush1.msra.mxu0 %v146
    %172 = vmatprep.subr.mxu0 0.0
    %173 = vmatpush1.msra.mxu0 %v147
    %174 = vmatprep.subr.mxu0 0.0
    %175 = vmatpush1.msra.mxu0 %v148
    %176 = vmatprep.subr.mxu0 0.0
    %177 = vmatpush1.msra.mxu0 %v149
    %178 = vmatprep.subr.mxu0 0.0
    %179 = vmatpush1.msra.mxu0 %v150
    %180 = vmatprep.subr.mxu0 0.0
    %181 = vmatpush1.msra.mxu0 %v151
    %182 = vmatprep.subr.mxu0 0.0
    %183 = vmatpush1.msra.mxu0 %v152
    %184 = vmatprep.subr.mxu0 0.0
    %185 = vmatpush1.msra.mxu0 %v153
    %186 = vmatprep.subr.mxu0 0.0
    %187 = vmatpush1.msra.mxu0 %v154
    %188 = vmatprep.subr.mxu0 0.0
    %189 = vmatpush1.msra.mxu0 %v155
    %190 = vmatprep.subr.mxu0 0.0
    %191 = vmatpush1.msra.mxu0 %v156
    %192 = vmatprep.subr.mxu0 0.0
    %193 = vmatpush1.msra.mxu0 %v157
    %194 = vmatprep.subr.mxu0 0.0
    %195 = vmatpush1.msra.mxu0 %v158
    %196 = vmatprep.subr.mxu0 0.0
    %197 = vmatpush1.msra.mxu0 %v159
    %198 = vmatprep.subr.mxu0 0.0
    %199 = vmatpush1.msra.mxu0 %v160
    %200 = vmatprep.subr.mxu0 0.0
    %201 = vmatpush1.msra.mxu0 %v161
    %202 = vmatprep.subr.mxu0 0.0
    %203 = vmatpush1.msra.mxu0 0.0
    %204 = vmatprep.subr.mxu0 0.0
    %205 = vmatpush1.msra.mxu0 0.0
    %206 = vmatprep.subr.mxu0 0.0
    %207 = vmatpush1.msra.mxu0 0.0
    %208 = vmatprep.subr.mxu0 0.0
    %209 = vmatpush1.msra.mxu0 0.0
    %210 = vmatprep.subr.mxu0 0.0
    %211 = vmatpush1.msra.mxu0 0.0
    %212 = vmatprep.subr.mxu0 0.0
    %213 = vmatpush1.msra.mxu0 0.0
    %214 = vmatprep.subr.mxu0 0.0
    %215 = vmatpush1.msra.mxu0 0.0
    %216 = vmatprep.subr.mxu0 0.0
    %217 = vmatpush1.msra.mxu0 0.0
    %218 = vmatprep.subr.mxu0 0.0
    %219 = vmatpush1.msra.mxu0 0.0
    %220 = vmatprep.subr.mxu0 0.0
    %221 = vmatpush1.msra.mxu0 0.0
    %222 = vmatprep.subr.mxu0 0.0
    %223 = vmatpush1.msra.mxu0 0.0
    %224 = vmatprep.subr.mxu0 0.0
    %225 = vmatpush1.msra.mxu0 0.0
    %226 = vmatprep.subr.mxu0 0.0
    %227 = vmatpush1.msra.mxu0 0.0
    %228 = vmatprep.subr.mxu0 0.0
    %229 = vmatpush1.msra.mxu0 0.0
    %230 = vmatprep.subr.mxu0 0.0
    %231 = vmatpush1.msra.mxu0 0.0
    %232 = vmatprep.subr.mxu0 0.0
    %233 = vmatpush1.msra.mxu0 0.0
    %234 = vmatprep.mubr.f32.mxu0 0.0
    %235 = vmatmul.mubr.f32.gmra.mrb[0].mxu0 %v143
    %v236 = vpop.f32.mrb[0].mxu0
    %v237 = vadd.f32 %v168, %v236
    %v238 = vpop.f32.mrb[0].mxu0
    %239 = vmatprep.mubr.f32.mxu0 0.0
    %240 = vmatmul.mubr.f32.gmra.mrb[0].mxu0 %v144
    %v241 = vpop.f32.mrb[0].mxu0
    %v242 = vadd.f32 %v168, %v241
    %v243 = vpop.f32.mrb[0].mxu0
    %244 = vdwg.mxu0
    %v245 = vmax.f32 %v237, 0.0
    %v246 = vmax.f32 %v242, 0.0
    %s247 = scalar_lea.vmem [#allocation5], 256
    %v248 = vld [vmem:[%s247] sm:$0xff]
    %v249 = vld [vmem:[%s247 + $0x8] sm:$0xff]
    %v250 = vld [vmem:[%s247 + $0x10] sm:$0xff]
    %v251 = vld [vmem:[%s247 + $0x18] sm:$0xff]
    %v252 = vld [vmem:[%s247 + $0x20] sm:$0xff]
    %v253 = vld [vmem:[%s247 + $0x28] sm:$0xff]
    %v254 = vld [vmem:[%s247 + $0x30] sm:$0xff]
    %v255 = vld [vmem:[%s247 + $0x38] sm:$0xff]
    %v256 = vld [vmem:[%s247 + $0x40] sm:$0xff]
    %v257 = vld [vmem:[%s247 + $0x48] sm:$0xff]
    %v258 = vld [vmem:[%s247 + $0x50] sm:$0xff]
    %v259 = vld [vmem:[%s247 + $0x58] sm:$0xff]
    %v260 = vld [vmem:[%s247 + $0x60] sm:$0xff]
    %v261 = vld [vmem:[%s247 + $0x68] sm:$0xff]
    %v262 = vld [vmem:[%s247 + $0x70] sm:$0xff]
    %v263 = vld [vmem:[%s247 + $0x78] sm:$0xff]
    %s264 = scalar_lea.vmem %s2, 2
    %v265 = vld [vmem:[%s264] sm:$0x1]
    %v267 = vlaneseq
    %v268 = vshrl.u32 %v267, 7
    %v269 = vsub.s32 0, %v268
    %v270 = vrot.slane %v265, %v269
    %272 = vmatprep.subr.mxu0 0.0
    %273 = vmatpush1.msra.mxu0 %v248
    %274 = vmatprep.subr.mxu0 0.0
    %275 = vmatpush1.msra.mxu0 %v249
    %276 = vmatprep.subr.mxu0 0.0
    %277 = vmatpush1.msra.mxu0 %v250
    %278 = vmatprep.subr.mxu0 0.0
    %279 = vmatpush1.msra.mxu0 %v251
    %280 = vmatprep.subr.mxu0 0.0
    %281 = vmatpush1.msra.mxu0 %v252
    %282 = vmatprep.subr.mxu0 0.0
    %283 = vmatpush1.msra.mxu0 %v253
    %284 = vmatprep.subr.mxu0 0.0
    %285 = vmatpush1.msra.mxu0 %v254
    %286 = vmatprep.subr.mxu0 0.0
    %287 = vmatpush1.msra.mxu0 %v255
    %288 = vmatprep.subr.mxu0 0.0
    %289 = vmatpush1.msra.mxu0 %v256
    %290 = vmatprep.subr.mxu0 0.0
    %291 = vmatpush1.msra.mxu0 %v257
    %292 = vmatprep.subr.mxu0 0.0
    %293 = vmatpush1.msra.mxu0 %v258
    %294 = vmatprep.subr.mxu0 0.0
    %295 = vmatpush1.msra.mxu0 %v259
    %296 = vmatprep.subr.mxu0 0.0
    %297 = vmatpush1.msra.mxu0 %v260
    %298 = vmatprep.subr.mxu0 0.0
    %299 = vmatpush1.msra.mxu0 %v261
    %300 = vmatprep.subr.mxu0 0.0
    %301 = vmatpush1.msra.mxu0 %v262
    %302 = vmatprep.subr.mxu0 0.0
    %303 = vmatpush1.msra.mxu0 %v263
    %304 = vmatprep.subr.mxu0 0.0
    %305 = vmatpush1.msra.mxu0 0.0
    %306 = vmatprep.subr.mxu0 0.0
    %307 = vmatpush1.msra.mxu0 0.0
    %308 = vmatprep.subr.mxu0 0.0
    %309 = vmatpush1.msra.mxu0 0.0
    %310 = vmatprep.subr.mxu0 0.0
    %311 = vmatpush1.msra.mxu0 0.0
    %312 = vmatprep.subr.mxu0 0.0
    %313 = vmatpush1.msra.mxu0 0.0
    %314 = vmatprep.subr.mxu0 0.0
    %315 = vmatpush1.msra.mxu0 0.0
    %316 = vmatprep.subr.mxu0 0.0
    %317 = vmatpush1.msra.mxu0 0.0
    %318 = vmatprep.subr.mxu0 0.0
    %319 = vmatpush1.msra.mxu0 0.0
    %320 = vmatprep.subr.mxu0 0.0
    %321 = vmatpush1.msra.mxu0 0.0
    %322 = vmatprep.subr.mxu0 0.0
    %323 = vmatpush1.msra.mxu0 0.0
    %324 = vmatprep.subr.mxu0 0.0
    %325 = vmatpush1.msra.mxu0 0.0
    %326 = vmatprep.subr.mxu0 0.0
    %327 = vmatpush1.msra.mxu0 0.0
    %328 = vmatprep.subr.mxu0 0.0
    %329 = vmatpush1.msra.mxu0 0.0
    %330 = vmatprep.subr.mxu0 0.0
    %331 = vmatpush1.msra.mxu0 0.0
    %332 = vmatprep.subr.mxu0 0.0
    %333 = vmatpush1.msra.mxu0 0.0
    %334 = vmatprep.subr.mxu0 0.0
    %335 = vmatpush1.msra.mxu0 0.0
    %336 = vmatprep.mubr.f32.mxu0 0.0
    %337 = vmatmul.mubr.f32.gmra.mrb[0].mxu0 %v245
    %v338 = vpop.f32.mrb[0].mxu0
    %v339 = vadd.f32 %v270, %v338
    %v340 = vpop.f32.mrb[0].mxu0
    %341 = vmatprep.mubr.f32.mxu0 0.0
    %342 = vmatmul.mubr.f32.gmra.mrb[0].mxu0 %v246
    %v343 = vpop.f32.mrb[0].mxu0
    %v344 = vadd.f32 %v270, %v343
    %v345 = vpop.f32.mrb[0].mxu0
    %346 = vdwg.mxu0
    %v347 = vmax.f32 %v339, 0.0
    %v348 = vmax.f32 %v344, 0.0
    %349 = vst [vmem:[#allocation7] sm:$0xff] %v347
    %350 = vst [vmem:[#allocation7 + $0x8] sm:$0xff] %v348
    // Predicated region
    $region22: #{tpu_custom_call.1} parent=1 // pred_check
      _
    $region23: #{tpu_custom_call.1} parent=1 // pred_check_branch
      %352 = sbr.rel (0) target = $region25
    $region24: #{tpu_custom_call.1} parent=1 // pred_region
      %s354 = ssub.s32 256, 256
      %355 = vsyncadd [#allocation4], %s354
      %s356 = sshll.u32 [#allocation7], 4
      %s357 = int_to_ptr.vmem [resolvable:$true] %s356
      %362 = dma.vmem_to_hbm [thread:$0]  %s357, 256, %s3, [#allocation4], 128, 128, 8
    $region25: #{tpu_custom_call.1} parent=1 // pred_fallthru
      _
    // Predicated region
    $region26: #{tpu_custom_call.1} parent=1 // pred_check
      _
    $region27: #{tpu_custom_call.1} parent=1 // pred_check_branch
      %364 = sbr.rel (0) target = $region29
    $region28: #{tpu_custom_call.1} parent=1 // pred_region
      %365 = dma.done [#allocation4], 256
    $region29: #{tpu_custom_call.1} parent=1 // pred_fallthru
      _
    %366 = vsyncpa [#allocation3], 1
    %367 = vsyncpa [#allocation6], 1
    %368 = vsyncpa [#allocation4], 1

// kernel: tpu_custom_call.1
$region0: #{tpu_custom_call.1}
  #allocation0 [shape = 'u32[]', space=smem, size = 0x4, offset = 0x4, fixed_abs, tag = 'smem constant byte address 0x4 - core index']
  #allocation1 [shape = 'u32[144,128]{1,0:T(1,128)}', space=vmem, size = 0x12000, scoped, tag = 'internal scratch']
  %s0 = inlined_call_operand.hbm [shape: f32[16,128], index: 0, kind: input, shape index: {}]
  %s1 = inlined_call_operand.hbm [shape: f32[3,128,128], index: 1, kind: input, shape index: {}]
  %s2 = inlined_call_operand.vmem [shape: f32[3,1,128], index: 2, kind: input, shape index: {}]
  %s3 = inlined_call_operand.hbm [shape: f32[16,128], index: 3, kind: output, shape index: {}]
  %s4 = sld [smem:[#allocation0]]
  $region30: #{tpu_custom_call.1} parent=0
    _
  %s6 = ssub.s32 1, %s4
  %s7 = scalar_select 0, %s6, %s4
  $region1: #{tpu_custom_call.1} parent=0
    #allocation2 [shape = 'u8[8192]{0}', space=vmem, size = 0x2000, scoped, tag = 'input window, operand 0, single buffered']
    #allocation3 [shape = 's32[1]{0}', space=sflag, size = 0x4, scoped, tag = 'scoped memory for tpu_custom_call.1']
    #allocation4 [shape = 's32[1]{0}', space=sflag, size = 0x4, scoped, tag = 'scoped memory for tpu_custom_call.1']
    #allocation5 [shape = 'u8[196608]{0}', space=vmem, size = 0x30000, scoped, tag = 'input window, operand 1, single buffered']
    #allocation6 [shape = 's32[1]{0}', space=sflag, size = 0x4, scoped, tag = 'scoped memory for tpu_custom_call.1']
    #allocation7 [shape = 'u8[8192]{0}', space=vmem, size = 0x2000, scoped, tag = 'output window, operand 0, single buffered']
    %8 = vsyncpa [#allocation3], 0
    %9 = vsyncpa [#allocation6], 0
    %10 = vsyncpa [#allocation4], 0
    // Predicated region
    $region2: #{tpu_custom_call.1} parent=1 // pred_check
      _
    $region3: #{tpu_custom_call.1} parent=1 // pred_check_branch
      %12 = sbr.rel (0) target = $region5
    $region4: #{tpu_custom_call.1} parent=1 // pred_region
      %s14 = ssub.s32 256, 256
      %15 = vsyncadd [#allocation3], %s14
      %s16 = sshll.u32 [#allocation2], 4
      %s17 = int_to_ptr.vmem [resolvable:$true] %s16
      %22 = dma.hbm_to_vmem [thread:$0]  %s0, 256, %s17, [#allocation3], 128, 128, 8
    $region5: #{tpu_custom_call.1} parent=1 // pred_fallthru
      _
    // Predicated region
    $region6: #{tpu_custom_call.1} parent=1 // pred_check
      _
    $region7: #{tpu_custom_call.1} parent=1 // pred_check_branch
      %24 = sbr.rel (0) target = $region9
    $region8: #{tpu_custom_call.1} parent=1 // pred_region
      %s26 = ssub.s32 6144, 6144
      %27 = vsyncadd [#allocation6], %s26
      %s28 = sshll.u32 [#allocation5], 4
      %s29 = int_to_ptr.vmem [resolvable:$true] %s28
      %34 = dma.hbm_to_vmem [thread:$0]  %s1, 6144, %s29, [#allocation6], 128, 128, 8
    $region9: #{tpu_custom_call.1} parent=1 // pred_fallthru
      _
    // Predicated region
    $region10: #{tpu_custom_call.1} parent=1 // pred_check
      _
    $region11: #{tpu_custom_call.1} parent=1 // pred_check_branch
      %36 = sbr.rel (0) target = $region13
    $region12: #{tpu_custom_call.1} parent=1 // pred_region
      _
    $region13: #{tpu_custom_call.1} parent=1 // pred_fallthru
      _
    // Predicated region
    $region14: #{tpu_custom_call.1} parent=1 // pred_check
      _
    $region15: #{tpu_custom_call.1} parent=1 // pred_check_branch
      %38 = sbr.rel (0) target = $region17
    $region16: #{tpu_custom_call.1} parent=1 // pred_region
      %39 = dma.done [#allocation3], 256
    $region17: #{tpu_custom_call.1} parent=1 // pred_fallthru
      _
    // Predicated region
    $region18: #{tpu_custom_call.1} parent=1 // pred_check
      _
    $region19: #{tpu_custom_call.1} parent=1 // pred_check_branch
      %41 = sbr.rel (0) target = $region21
    $region20: #{tpu_custom_call.1} parent=1 // pred_region
      %42 = dma.done [#allocation6], 6144
    $region21: #{tpu_custom_call.1} parent=1 // pred_fallthru
      _
    %v43 = vld [vmem:[#allocation2] sm:$0xff]
    %v44 = vld [vmem:[#allocation2 + $0x8] sm:$0xff]
    %v45 = vld [vmem:[#allocation5] sm:$0xff]
    %v46 = vld [vmem:[#allocation5 + $0x8] sm:$0xff]
    %v47 = vld [vmem:[#allocation5 + $0x10] sm:$0xff]
    %v48 = vld [vmem:[#allocation5 + $0x18] sm:$0xff]
    %v49 = vld [vmem:[#allocation5 + $0x20] sm:$0xff]
    %v50 = vld [vmem:[#allocation5 + $0x28] sm:$0xff]
    %v51 = vld [vmem:[#allocation5 + $0x30] sm:$0xff]
    %v52 = vld [vmem:[#allocation5 + $0x38] sm:$0xff]
    %v53 = vld [vmem:[#allocation5 + $0x40] sm:$0xff]
    %v54 = vld [vmem:[#allocation5 + $0x48] sm:$0xff]
    %v55 = vld [vmem:[#allocation5 + $0x50] sm:$0xff]
    %v56 = vld [vmem:[#allocation5 + $0x58] sm:$0xff]
    %v57 = vld [vmem:[#allocation5 + $0x60] sm:$0xff]
    %v58 = vld [vmem:[#allocation5 + $0x68] sm:$0xff]
    %v59 = vld [vmem:[#allocation5 + $0x70] sm:$0xff]
    %v60 = vld [vmem:[#allocation5 + $0x78] sm:$0xff]
    %v61 = vld [vmem:[%s2] sm:$0x1]
    %v63 = vlaneseq
    %v64 = vshrl.u32 %v63, 7
    %v65 = vsub.s32 0, %v64
    %v66 = vrot.slane %v61, %v65
    %68 = vmatprep.subr.mxu0 0.0
    %69 = vmatpush1.msra.mxu0 %v45
    %70 = vmatprep.subr.mxu0 0.0
    %71 = vmatpush1.msra.mxu0 %v46
    %72 = vmatprep.subr.mxu0 0.0
    %73 = vmatpush1.msra.mxu0 %v47
    %74 = vmatprep.subr.mxu0 0.0
    %75 = vmatpush1.msra.mxu0 %v48
    %76 = vmatprep.subr.mxu0 0.0
    %77 = vmatpush1.msra.mxu0 %v49
    %78 = vmatprep.subr.mxu0 0.0
    %79 = vmatpush1.msra.mxu0 %v50
    %80 = vmatprep.subr.mxu0 0.0
    %81 = vmatpush1.msra.mxu0 %v51
    %82 = vmatprep.subr.mxu0 0.0
    %83 = vmatpush1.msra.mxu0 %v52
    %84 = vmatprep.subr.mxu0 0.0
    %85 = vmatpush1.msra.mxu0 %v53
    %86 = vmatprep.subr.mxu0 0.0
    %87 = vmatpush1.msra.mxu0 %v54
    %88 = vmatprep.subr.mxu0 0.0
    %89 = vmatpush1.msra.mxu0 %v55
    %90 = vmatprep.subr.mxu0 0.0
    %91 = vmatpush1.msra.mxu0 %v56
    %92 = vmatprep.subr.mxu0 0.0
    %93 = vmatpush1.msra.mxu0 %v57
    %94 = vmatprep.subr.mxu0 0.0
    %95 = vmatpush1.msra.mxu0 %v58
    %96 = vmatprep.subr.mxu0 0.0
    %97 = vmatpush1.msra.mxu0 %v59
    %98 = vmatprep.subr.mxu0 0.0
    %99 = vmatpush1.msra.mxu0 %v60
    %100 = vmatprep.subr.mxu0 0.0
    %101 = vmatpush1.msra.mxu0 0.0
    %102 = vmatprep.subr.mxu0 0.0
    %103 = vmatpush1.msra.mxu0 0.0
    %104 = vmatprep.subr.mxu0 0.0
    %105 = vmatpush1.msra.mxu0 0.0
    %106 = vmatprep.subr.mxu0 0.0
    %107 = vmatpush1.msra.mxu0 0.0
    %108 = vmatprep.subr.mxu0 0.0
    %109 = vmatpush1.msra.mxu0 0.0
    %110 = vmatprep.subr.mxu0 0.0
    %111 = vmatpush1.msra.mxu0 0.0
    %112 = vmatprep.subr.mxu0 0.0
    %113 = vmatpush1.msra.mxu0 0.0
    %114 = vmatprep.subr.mxu0 0.0
    %115 = vmatpush1.msra.mxu0 0.0
    %116 = vmatprep.subr.mxu0 0.0
    %117 = vmatpush1.msra.mxu0 0.0
    %118 = vmatprep.subr.mxu0 0.0
    %119 = vmatpush1.msra.mxu0 0.0
    %120 = vmatprep.subr.mxu0 0.0
    %121 = vmatpush1.msra.mxu0 0.0
    %122 = vmatprep.subr.mxu0 0.0
    %123 = vmatpush1.msra.mxu0 0.0
    %124 = vmatprep.subr.mxu0 0.0
    %125 = vmatpush1.msra.mxu0 0.0
    %126 = vmatprep.subr.mxu0 0.0
    %127 = vmatpush1.msra.mxu0 0.0
    %128 = vmatprep.subr.mxu0 0.0
    %129 = vmatpush1.msra.mxu0 0.0
    %130 = vmatprep.subr.mxu0 0.0
    %131 = vmatpush1.msra.mxu0 0.0
    %132 = vmatprep.mubr.f32.mxu0 0.0
    %133 = vmatmul.mubr.f32.gmra.mrb[0].mxu0 %v43
    %v134 = vpop.f32.mrb[0].mxu0
    %v135 = vadd.f32 %v66, %v134
    %v136 = vpop.f32.mrb[0].mxu0
    %137 = vmatprep.mubr.f32.mxu0 0.0
    %138 = vmatmul.mubr.f32.gmra.mrb[0].mxu0 %v44
    %v139 = vpop.f32.mrb[0].mxu0
    %v140 = vadd.f32 %v66, %v139
    %v141 = vpop.f32.mrb[0].mxu0
    %142 = vdwg.mxu0
    %v143 = vmax.f32 %v135, 0.0
    %v144 = vmax.f32 %v140, 0.0
    %s145 = scalar_lea.vmem [#allocation5], 128
    %v146 = vld [vmem:[%s145] sm:$0xff]
    %v147 = vld [vmem:[%s145 + $0x8] sm:$0xff]
    %v148 = vld [vmem:[%s145 + $0x10] sm:$0xff]
    %v149 = vld [vmem:[%s145 + $0x18] sm:$0xff]
    %v150 = vld [vmem:[%s145 + $0x20] sm:$0xff]
    %v151 = vld [vmem:[%s145 + $0x28] sm:$0xff]
    %v152 = vld [vmem:[%s145 + $0x30] sm:$0xff]
    %v153 = vld [vmem:[%s145 + $0x38] sm:$0xff]
    %v154 = vld [vmem:[%s145 + $0x40] sm:$0xff]
    %v155 = vld [vmem:[%s145 + $0x48] sm:$0xff]
    %v156 = vld [vmem:[%s145 + $0x50] sm:$0xff]
    %v157 = vld [vmem:[%s145 + $0x58] sm:$0xff]
    %v158 = vld [vmem:[%s145 + $0x60] sm:$0xff]
    %v159 = vld [vmem:[%s145 + $0x68] sm:$0xff]
    %v160 = vld [vmem:[%s145 + $0x70] sm:$0xff]
    %v161 = vld [vmem:[%s145 + $0x78] sm:$0xff]
    %s162 = scalar_lea.vmem %s2, 1
    %v163 = vld [vmem:[%s162] sm:$0x1]
    %v165 = vlaneseq
    %v166 = vshrl.u32 %v165, 7
    %v167 = vsub.s32 0, %v166
    %v168 = vrot.slane %v163, %v167
    %170 = vmatprep.subr.mxu0 0.0
    %171 = vmatpush1.msra.mxu0 %v146
    %172 = vmatprep.subr.mxu0 0.0
    %173 = vmatpush1.msra.mxu0 %v147
    %174 = vmatprep.subr.mxu0 0.0
    %175 = vmatpush1.msra.mxu0 %v148
    %176 = vmatprep.subr.mxu0 0.0
    %177 = vmatpush1.msra.mxu0 %v149
    %178 = vmatprep.subr.mxu0 0.0
    %179 = vmatpush1.msra.mxu0 %v150
    %180 = vmatprep.subr.mxu0 0.0
    %181 = vmatpush1.msra.mxu0 %v151
    %182 = vmatprep.subr.mxu0 0.0
    %183 = vmatpush1.msra.mxu0 %v152
    %184 = vmatprep.subr.mxu0 0.0
    %185 = vmatpush1.msra.mxu0 %v153
    %186 = vmatprep.subr.mxu0 0.0
    %187 = vmatpush1.msra.mxu0 %v154
    %188 = vmatprep.subr.mxu0 0.0
    %189 = vmatpush1.msra.mxu0 %v155
    %190 = vmatprep.subr.mxu0 0.0
    %191 = vmatpush1.msra.mxu0 %v156
    %192 = vmatprep.subr.mxu0 0.0
    %193 = vmatpush1.msra.mxu0 %v157
    %194 = vmatprep.subr.mxu0 0.0
    %195 = vmatpush1.msra.mxu0 %v158
    %196 = vmatprep.subr.mxu0 0.0
    %197 = vmatpush1.msra.mxu0 %v159
    %198 = vmatprep.subr.mxu0 0.0
    %199 = vmatpush1.msra.mxu0 %v160
    %200 = vmatprep.subr.mxu0 0.0
    %201 = vmatpush1.msra.mxu0 %v161
    %202 = vmatprep.subr.mxu0 0.0
    %203 = vmatpush1.msra.mxu0 0.0
    %204 = vmatprep.subr.mxu0 0.0
    %205 = vmatpush1.msra.mxu0 0.0
    %206 = vmatprep.subr.mxu0 0.0
    %207 = vmatpush1.msra.mxu0 0.0
    %208 = vmatprep.subr.mxu0 0.0
    %209 = vmatpush1.msra.mxu0 0.0
    %210 = vmatprep.subr.mxu0 0.0
    %211 = vmatpush1.msra.mxu0 0.0
    %212 = vmatprep.subr.mxu0 0.0
    %213 = vmatpush1.msra.mxu0 0.0
    %214 = vmatprep.subr.mxu0 0.0
    %215 = vmatpush1.msra.mxu0 0.0
    %216 = vmatprep.subr.mxu0 0.0
    %217 = vmatpush1.msra.mxu0 0.0
    %218 = vmatprep.subr.mxu0 0.0
    %219 = vmatpush1.msra.mxu0 0.0
    %220 = vmatprep.subr.mxu0 0.0
    %221 = vmatpush1.msra.mxu0 0.0
    %222 = vmatprep.subr.mxu0 0.0
    %223 = vmatpush1.msra.mxu0 0.0
    %224 = vmatprep.subr.mxu0 0.0
    %225 = vmatpush1.msra.mxu0 0.0
    %226 = vmatprep.subr.mxu0 0.0
    %227 = vmatpush1.msra.mxu0 0.0
    %228 = vmatprep.subr.mxu0 0.0
    %229 = vmatpush1.msra.mxu0 0.0
    %230 = vmatprep.subr.mxu0 0.0
    %231 = vmatpush1.msra.mxu0 0.0
    %232 = vmatprep.subr.mxu0 0.0
    %233 = vmatpush1.msra.mxu0 0.0
    %234 = vmatprep.mubr.f32.mxu0 0.0
    %235 = vmatmul.mubr.f32.gmra.mrb[0].mxu0 %v143
    %v236 = vpop.f32.mrb[0].mxu0
    %v237 = vadd.f32 %v168, %v236
    %v238 = vpop.f32.mrb[0].mxu0
    %239 = vmatprep.mubr.f32.mxu0 0.0
    %240 = vmatmul.mubr.f32.gmra.mrb[0].mxu0 %v144
    %v241 = vpop.f32.mrb[0].mxu0
    %v242 = vadd.f32 %v168, %v241
    %v243 = vpop.f32.mrb[0].mxu0
    %244 = vdwg.mxu0
    %v245 = vmax.f32 %v237, 0.0
    %v246 = vmax.f32 %v242, 0.0
    %s247 = scalar_lea.vmem [#allocation5], 256
    %v248 = vld [vmem:[%s247] sm:$0xff]
    %v249 = vld [vmem:[%s247 + $0x8] sm:$0xff]
    %v250 = vld [vmem:[%s247 + $0x10] sm:$0xff]
    %v251 = vld [vmem:[%s247 + $0x18] sm:$0xff]
    %v252 = vld [vmem:[%s247 + $0x20] sm:$0xff]
    %v253 = vld [vmem:[%s247 + $0x28] sm:$0xff]
    %v254 = vld [vmem:[%s247 + $0x30] sm:$0xff]
    %v255 = vld [vmem:[%s247 + $0x38] sm:$0xff]
    %v256 = vld [vmem:[%s247 + $0x40] sm:$0xff]
    %v257 = vld [vmem:[%s247 + $0x48] sm:$0xff]
    %v258 = vld [vmem:[%s247 + $0x50] sm:$0xff]
    %v259 = vld [vmem:[%s247 + $0x58] sm:$0xff]
    %v260 = vld [vmem:[%s247 + $0x60] sm:$0xff]
    %v261 = vld [vmem:[%s247 + $0x68] sm:$0xff]
    %v262 = vld [vmem:[%s247 + $0x70] sm:$0xff]
    %v263 = vld [vmem:[%s247 + $0x78] sm:$0xff]
    %s264 = scalar_lea.vmem %s2, 2
    %v265 = vld [vmem:[%s264] sm:$0x1]
    %v267 = vlaneseq
    %v268 = vshrl.u32 %v267, 7
    %v269 = vsub.s32 0, %v268
    %v270 = vrot.slane %v265, %v269
    %272 = vmatprep.subr.mxu0 0.0
    %273 = vmatpush1.msra.mxu0 %v248
    %274 = vmatprep.subr.mxu0 0.0
    %275 = vmatpush1.msra.mxu0 %v249
    %276 = vmatprep.subr.mxu0 0.0
    %277 = vmatpush1.msra.mxu0 %v250
    %278 = vmatprep.subr.mxu0 0.0
    %279 = vmatpush1.msra.mxu0 %v251
    %280 = vmatprep.subr.mxu0 0.0
    %281 = vmatpush1.msra.mxu0 %v252
    %282 = vmatprep.subr.mxu0 0.0
    %283 = vmatpush1.msra.mxu0 %v253
    %284 = vmatprep.subr.mxu0 0.0
    %285 = vmatpush1.msra.mxu0 %v254
    %286 = vmatprep.subr.mxu0 0.0
    %287 = vmatpush1.msra.mxu0 %v255
    %288 = vmatprep.subr.mxu0 0.0
    %289 = vmatpush1.msra.mxu0 %v256
    %290 = vmatprep.subr.mxu0 0.0
    %291 = vmatpush1.msra.mxu0 %v257
    %292 = vmatprep.subr.mxu0 0.0
    %293 = vmatpush1.msra.mxu0 %v258
    %294 = vmatprep.subr.mxu0 0.0
    %295 = vmatpush1.msra.mxu0 %v259
    %296 = vmatprep.subr.mxu0 0.0
    %297 = vmatpush1.msra.mxu0 %v260
    %298 = vmatprep.subr.mxu0 0.0
    %299 = vmatpush1.msra.mxu0 %v261
    %300 = vmatprep.subr.mxu0 0.0
    %301 = vmatpush1.msra.mxu0 %v262
    %302 = vmatprep.subr.mxu0 0.0
    %303 = vmatpush1.msra.mxu0 %v263
    %304 = vmatprep.subr.mxu0 0.0
    %305 = vmatpush1.msra.mxu0 0.0
    %306 = vmatprep.subr.mxu0 0.0
    %307 = vmatpush1.msra.mxu0 0.0
    %308 = vmatprep.subr.mxu0 0.0
    %309 = vmatpush1.msra.mxu0 0.0
    %310 = vmatprep.subr.mxu0 0.0
    %311 = vmatpush1.msra.mxu0 0.0
    %312 = vmatprep.subr.mxu0 0.0
    %313 = vmatpush1.msra.mxu0 0.0
    %314 = vmatprep.subr.mxu0 0.0
    %315 = vmatpush1.msra.mxu0 0.0
    %316 = vmatprep.subr.mxu0 0.0
    %317 = vmatpush1.msra.mxu0 0.0
    %318 = vmatprep.subr.mxu0 0.0
    %319 = vmatpush1.msra.mxu0 0.0
    %320 = vmatprep.subr.mxu0 0.0
    %321 = vmatpush1.msra.mxu0 0.0
    %322 = vmatprep.subr.mxu0 0.0
    %323 = vmatpush1.msra.mxu0 0.0
    %324 = vmatprep.subr.mxu0 0.0
    %325 = vmatpush1.msra.mxu0 0.0
    %326 = vmatprep.subr.mxu0 0.0
    %327 = vmatpush1.msra.mxu0 0.0
    %328 = vmatprep.subr.mxu0 0.0
    %329 = vmatpush1.msra.mxu0 0.0
    %330 = vmatprep.subr.mxu0 0.0
    %331 = vmatpush1.msra.mxu0 0.0
    %332 = vmatprep.subr.mxu0 0.0
    %333 = vmatpush1.msra.mxu0 0.0
    %334 = vmatprep.subr.mxu0 0.0
    %335 = vmatpush1.msra.mxu0 0.0
    %336 = vmatprep.mubr.f32.mxu0 0.0
    %337 = vmatmul.mubr.f32.gmra.mrb[0].mxu0 %v245
    %v338 = vpop.f32.mrb[0].mxu0
    %v339 = vadd.f32 %v270, %v338
    %v340 = vpop.f32.mrb[0].mxu0
    %341 = vmatprep.mubr.f32.mxu0 0.0
    %342 = vmatmul.mubr.f32.gmra.mrb[0].mxu0 %v246
    %v343 = vpop.f32.mrb[0].mxu0
    %v344 = vadd.f32 %v270, %v343
    %v345 = vpop.f32.mrb[0].mxu0
    %346 = vdwg.mxu0
    %v347 = vmax.f32 %v339, 0.0
    %v348 = vmax.f32 %v344, 0.0
    %349 = vst [vmem:[#allocation7] sm:$0xff] %v347
    %350 = vst [vmem:[#allocation7 + $0x8] sm:$0xff] %v348
    // Predicated region
    $region22: #{tpu_custom_call.1} parent=1 // pred_check
      _
    $region23: #{tpu_custom_call.1} parent=1 // pred_check_branch
      %352 = sbr.rel (0) target = $region25
    $region24: #{tpu_custom_call.1} parent=1 // pred_region
      %s354 = ssub.s32 256, 256
      %355 = vsyncadd [#allocation4], %s354
      %s356 = sshll.u32 [#allocation7], 4
      %s357 = int_to_ptr.vmem [resolvable:$true] %s356
      %362 = dma.vmem_to_hbm [thread:$0]  %s357, 256, %s3, [#allocation4], 128, 128, 8
    $region25: #{tpu_custom_call.1} parent=1 // pred_fallthru
      _
    // Predicated region
    $region26: #{tpu_custom_call.1} parent=1 // pred_check
      _
    $region27: #{tpu_custom_call.1} parent=1 // pred_check_branch
      %364 = sbr.rel (0) target = $region29
    $region28: #{tpu_custom_call.1} parent=1 // pred_region
      %365 = dma.done [#allocation4], 256
    $region29: #{tpu_custom_call.1} parent=1 // pred_fallthru
      _
    %366 = vsyncpa [#allocation3], 1
    %367 = vsyncpa [#allocation6], 1
    %368 = vsyncpa [#allocation4], 1

// kernel: tpu_custom_call.1
$region0: #{tpu_custom_call.1}
  #allocation0 [shape = 'u32[]', space=smem, size = 0x4, offset = 0x4, fixed_abs, tag = 'smem constant byte address 0x4 - core index']
  #allocation1 [shape = 'u32[144,128]{1,0:T(1,128)}', space=vmem, size = 0x12000, scoped, tag = 'internal scratch']
  #allocation2 [shape = 'f32[16,128]{1,0:T(8,128)}', space=vmem, size = 0x2000, scoped, tag = 'scratch operand']
  %s0 = inlined_call_operand.hbm [shape: f32[16,128], index: 0, kind: input, shape index: {}]
  %s1 = inlined_call_operand.hbm [shape: f32[3,128,128], index: 1, kind: input, shape index: {}]
  %s2 = inlined_call_operand.vmem [shape: f32[3,1,128], index: 2, kind: input, shape index: {}]
  %s3 = inlined_call_operand.hbm [shape: f32[16,128], index: 3, kind: output, shape index: {}]
  %s4 = sld [smem:[#allocation0]]
  $region65: #{tpu_custom_call.1} parent=0
    _
  %s6 = ssub.s32 1, %s4
  %s7 = scalar_select 0, %s6, %s4
  $region1: #{tpu_custom_call.1} parent=0
    #allocation3 [shape = 'u8[8192]{0}', space=vmem, size = 0x2000, scoped, tag = 'input window, operand 0, single buffered']
    #allocation4 [shape = 's32[2]{0}', space=sflag, size = 0x8, scoped, tag = 'scoped memory for tpu_custom_call.1']
    #allocation5 [shape = 's32[2]{0}', space=sflag, size = 0x8, scoped, tag = 'scoped memory for tpu_custom_call.1']
    #allocation6 [shape = 'u8[131072]{0}', space=vmem, size = 0x20000, scoped, tag = 'input window, operand 1']
    #allocation7 [shape = 's32[2]{0}', space=sflag, size = 0x8, scoped, tag = 'scoped memory for tpu_custom_call.1']
    #allocation8 [shape = 'u8[8192]{0}', space=vmem, size = 0x2000, scoped, tag = 'output window, operand 0, single buffered']
    %8 = vsyncpa [#allocation4], 0
    %9 = vsyncpa [#allocation7], 0
    %s10 = scalar_lea.sflag [#allocation7], 1
    %11 = vsyncpa %s10, 0
    %12 = vsyncpa [#allocation5], 0
    loop: start=0, step=1, limit=5
    $region2: #{tpu_custom_call.1} parent=1 // loop_pre_header
      _
    $region3: #{tpu_custom_call.1} parent=1 // loop_header
      %s14 = sphi 0, %s18
      %p15 = scmp.ge.s32.totalorder %s14, 5
      %s21 = sphi 0, %s33
      %s22 = sphi 0, %s29
      %s23 = sphi 0, %s21
      %s24 = sphi 0, %s22
      %s25 = sphi 0, %s23
      %s26 = sphi 0, %s24
      %s36 = sphi 0, %s38
      %s39 = sphi 0, %s36
      %s40 = sphi 0, %s39
      %s56 = sphi 0, %s40
      %s62 = sphi 0, %s64
      %s65 = sphi 0, %s62
      %s66 = sphi 0, %s65
      %s82 = sphi 0, %s66
      %s88 = sphi 0, %s90
      %s91 = sphi 0, %s88
      %s92 = sphi 0, %s91
      %s108 = sphi 0, %s92
      %s114 = sphi 0, %s116
      %s117 = sphi 0, %s114
      %s118 = sphi 0, %s117
      %s134 = sphi 0, %s118
    $region4: #{tpu_custom_call.1} parent=1 // loop_header_branch
      %17 = sbr.rel (%p15) target = $region8
    $region5: #{tpu_custom_call.1} parent=1 // loop_body
      %s19 = ssub.s32 %s14, 1
      %s20 = ssub.s32 %s14, 2
      %s27 = sadd.s32 1, %s22
      %p28 = scmp.ge.s32.totalorder %s27, 3
      %s29 = scalar_select %p28, 0, %s27
      %s30 = sadd.s32 1, %s21
      %s31 = scalar_select %p28, %s30, %s21
      %p32 = scmp.ge.s32.totalorder %s31, 1
      %s33 = scalar_select %p32, 0, %s31
      %s34 = ssub.s32 %s21, %s33
      %p35 = scmp.eq.s32.totalorder %s34, 0
      %s37 = sadd.s32 %s36, 1
      %s38 = scalar_select %p35, %s36, %s37
      %p41 = pneg %p35
      %p42 = scmp.eq.s32.totalorder %s14, 2
      %p43 = por %p41, %p42
      %p44 = scmp.ne.s32.totalorder %s36, %s39
      %p45 = scmp.eq.s32.totalorder %s14, 0
      %p46 = por %p44, %p45
      %p47 = scmp.ne.s32.totalorder %s36, %s39
      %p48 = scmp.eq.s32.totalorder %s19, 2
      %p49 = por %p47, %p48
      %p50 = scmp.ne.s32.totalorder %s39, %s40
      %p51 = scmp.eq.s32.totalorder %s19, 0
      %p52 = por %p50, %p51
      %p53 = scmp.ne.s32.totalorder %s39, %s40
      %p54 = scmp.eq.s32.totalorder %s20, 2
      %p55 = por %p53, %p54
      %p57 = scmp.ne.s32.totalorder %s40, %s56
      %p58 = scmp.eq.s32.totalorder %s20, 0
      %p59 = por %p57, %p58
      %s60 = ssub.s32 %s22, %s29
      %p61 = scmp.eq.s32.totalorder %s60, 0
      %s63 = sadd.s32 %s62, 1
      %s64 = scalar_select %p61, %s62, %s63
      %p67 = pneg %p61
      %p68 = scmp.eq.s32.totalorder %s14, 2
      %p69 = por %p67, %p68
      %p70 = scmp.ne.s32.totalorder %s62, %s65
      %p71 = scmp.eq.s32.totalorder %s14, 0
      %p72 = por %p70, %p71
      %p73 = scmp.ne.s32.totalorder %s62, %s65
      %p74 = scmp.eq.s32.totalorder %s19, 2
      %p75 = por %p73, %p74
      %p76 = scmp.ne.s32.totalorder %s65, %s66
      %p77 = scmp.eq.s32.totalorder %s19, 0
      %p78 = por %p76, %p77
      %p79 = scmp.ne.s32.totalorder %s65, %s66
      %p80 = scmp.eq.s32.totalorder %s20, 2
      %p81 = por %p79, %p80
      %p83 = scmp.ne.s32.totalorder %s66, %s82
      %p84 = scmp.eq.s32.totalorder %s20, 0
      %p85 = por %p83, %p84
      %s86 = ssub.s32 %s22, %s29
      %p87 = scmp.eq.s32.totalorder %s86, 0
      %s89 = sadd.s32 %s88, 1
      %s90 = scalar_select %p87, %s88, %s89
      %p93 = pneg %p87
      %p94 = scmp.eq.s32.totalorder %s14, 2
      %p95 = por %p93, %p94
      %p96 = scmp.ne.s32.totalorder %s88, %s91
      %p97 = scmp.eq.s32.totalorder %s14, 0
      %p98 = por %p96, %p97
      %p99 = scmp.ne.s32.totalorder %s88, %s91
      %p100 = scmp.eq.s32.totalorder %s19, 2
      %p101 = por %p99, %p100
      %p102 = scmp.ne.s32.totalorder %s91, %s92
      %p103 = scmp.eq.s32.totalorder %s19, 0
      %p104 = por %p102, %p103
      %p105 = scmp.ne.s32.totalorder %s91, %s92
      %p106 = scmp.eq.s32.totalorder %s20, 2
      %p107 = por %p105, %p106
      %p109 = scmp.ne.s32.totalorder %s92, %s108
      %p110 = scmp.eq.s32.totalorder %s20, 0
      %p111 = por %p109, %p110
      %s112 = ssub.s32 %s21, %s33
      %p113 = scmp.eq.s32.totalorder %s112, 0
      %s115 = sadd.s32 %s114, 1
      %s116 = scalar_select %p113, %s114, %s115
      %p119 = pneg %p113
      %p120 = scmp.eq.s32.totalorder %s14, 2
      %p121 = por %p119, %p120
      %p122 = scmp.ne.s32.totalorder %s114, %s117
      %p123 = scmp.eq.s32.totalorder %s14, 0
      %p124 = por %p122, %p123
      %p125 = scmp.ne.s32.totalorder %s114, %s117
      %p126 = scmp.eq.s32.totalorder %s19, 2
      %p127 = por %p125, %p126
      %p128 = scmp.ne.s32.totalorder %s117, %s118
      %p129 = scmp.eq.s32.totalorder %s19, 0
      %p130 = por %p128, %p129
      %p131 = scmp.ne.s32.totalorder %s117, %s118
      %p132 = scmp.eq.s32.totalorder %s20, 2
      %p133 = por %p131, %p132
      %p135 = scmp.ne.s32.totalorder %s118, %s134
      %p136 = scmp.eq.s32.totalorder %s20, 0
      %p137 = por %p135, %p136
      %p138 = scmp.le.s32.totalorder 1, %s14
      %p139 = scmp.lt.s32.totalorder %s14, 4
      %p140 = pnand %p138, %p139
      %p141 = pneg %p140
      // Predicated region
      $region9: #{tpu_custom_call.1} parent=5 // pred_check
        _
      $region10: #{tpu_custom_call.1} parent=5 // pred_check_branch
        %143 = sbr.rel (%p140) target = $region12
      $region11: #{tpu_custom_call.1} parent=5 // pred_region
        %s144 = ssub.s32 %s14, 1
        // Predicated region
        $region13: #{tpu_custom_call.1} parent=11 // pred_check
          %p145 = pneg %p52
        $region14: #{tpu_custom_call.1} parent=11 // pred_check_branch
          %147 = sbr.rel (%p145) target = $region16
        $region15: #{tpu_custom_call.1} parent=11 // pred_region
          %s148 = smul.u32 2, %s23
          %s150 = ssub.s32 256, 256
          %151 = vsyncadd [#allocation4], %s150
          %s152 = smul.addr %s148, 128
          %s153 = scalar_lea.hbm %s0, %s152
          %s154 = sshll.u32 [#allocation3], 4
          %s155 = int_to_ptr.vmem [resolvable:$true] %s154
          %160 = dma.hbm_to_vmem [thread:$0]  %s153, 256, %s155, [#allocation4], 128, 128, 8
        $region16: #{tpu_custom_call.1} parent=11 // pred_fallthru
          _
      $region12: #{tpu_custom_call.1} parent=5 // pred_fallthru
        _
      %p161 = scmp.lt.s32.totalorder %s14, 3
      // Predicated region
      $region17: #{tpu_custom_call.1} parent=5 // pred_check
        %p162 = pneg %p161
      $region18: #{tpu_custom_call.1} parent=5 // pred_check_branch
        %164 = sbr.rel (%p162) target = $region20
      $region19: #{tpu_custom_call.1} parent=5 // pred_region
        // Predicated region
        $region21: #{tpu_custom_call.1} parent=19 // pred_check
          %p165 = pneg %p72
        $region22: #{tpu_custom_call.1} parent=19 // pred_check_branch
          %167 = sbr.rel (%p165) target = $region24
        $region23: #{tpu_custom_call.1} parent=19 // pred_region
          %s168 = sand.u32 %s62, 1
          %s169 = scalar_lea.sflag [#allocation7], %s168
          %s170 = sand.u32 %s62, 1
          %s171 = smul.addr %s170, 128
          %s172 = scalar_lea.vmem [#allocation6], %s171
          %s174 = ssub.s32 2048, 2048
          %175 = vsyncadd %s169, %s174
          %s176 = smul.addr %s22, 16
          %s177 = smul.addr %s176, 128
          %s178 = scalar_lea.hbm %s1, %s177
          %s179 = sshll.u32 %s172, 4
          %s180 = int_to_ptr.vmem [resolvable:$true] %s179
          %185 = dma.hbm_to_vmem [thread:$0]  %s178, 2048, %s180, %s169, 128, 128, 8
        $region24: #{tpu_custom_call.1} parent=19 // pred_fallthru
          _
        // Predicated region
        $region25: #{tpu_custom_call.1} parent=19 // pred_check
          %p186 = pneg %p98
        $region26: #{tpu_custom_call.1} parent=19 // pred_check_branch
          %188 = sbr.rel (%p186) target = $region28
        $region27: #{tpu_custom_call.1} parent=19 // pred_region
          %p189 = scmp.lt.s32.totalorder %s22, 2
          %s190 = scalar_select %p189, %s22, 2
          %s191 = scalar_lea.vmem %s2, %s190
        $region28: #{tpu_custom_call.1} parent=19 // pred_fallthru
          _
      $region20: #{tpu_custom_call.1} parent=5 // pred_fallthru
        _
      %p192 = scmp.le.s32.totalorder 1, %s14
      %p193 = scmp.lt.s32.totalorder %s14, 4
      %p194 = pnand %p192, %p193
      %p195 = pneg %p194
      // Predicated region
      $region29: #{tpu_custom_call.1} parent=5 // pred_check
        _
      $region30: #{tpu_custom_call.1} parent=5 // pred_check_branch
        %197 = sbr.rel (%p194) target = $region32
      $region31: #{tpu_custom_call.1} parent=5 // pred_region
        %s198 = ssub.s32 %s14, 1
        // Predicated region
        $region33: #{tpu_custom_call.1} parent=31 // pred_check
          %p199 = pneg %p52
        $region34: #{tpu_custom_call.1} parent=31 // pred_check_branch
          %201 = sbr.rel (%p199) target = $region36
        $region35: #{tpu_custom_call.1} parent=31 // pred_region
          %202 = dma.done [#allocation4], 256
        $region36: #{tpu_custom_call.1} parent=31 // pred_fallthru
          _
        %s203 = sand.u32 %s65, 1
        %s204 = scalar_lea.sflag [#allocation7], %s203
        %s205 = sand.u32 %s65, 1
        %s206 = smul.addr %s205, 128
        %s207 = scalar_lea.vmem [#allocation6], %s206
        // Predicated region
        $region37: #{tpu_custom_call.1} parent=31 // pred_check
          %p208 = pneg %p78
        $region38: #{tpu_custom_call.1} parent=31 // pred_check_branch
          %210 = sbr.rel (%p208) target = $region40
        $region39: #{tpu_custom_call.1} parent=31 // pred_region
          %211 = dma.done %s204, 2048
        $region40: #{tpu_custom_call.1} parent=31 // pred_fallthru
          _
        %p212 = pneg %p52
        %p213 = pneg %p49
        %s214 = sand.u32 %s65, 1
        %s215 = scalar_lea.sflag [#allocation7], %s214
        %s216 = sand.u32 %s65, 1
        %s217 = smul.addr %s216, 128
        %s218 = scalar_lea.vmem [#allocation6], %s217
        %p219 = pneg %p78
        %p220 = pneg %p75
        %p221 = scmp.lt.s32.totalorder %s24, 2
        %s222 = scalar_select %p221, %s24, 2
        %s223 = scalar_lea.vmem %s2, %s222
        %p224 = pneg %p104
        %p225 = pneg %p101
        %p226 = pneg %p130
        %p227 = pneg %p127
        %s228 = smul.u32 2, %s23
        %p229 = scmp.lt.s32.totalorder %s24, 2
        %s230 = scalar_select %p229, %s24, 2
        %s231 = scalar_lea.vmem %s2, %s230
        %s232 = smul.u32 2, %s23
        %p233 = scmp.eq.s32.totalorder %s24, 0
        // Predicated region
        $region41: #{tpu_custom_call.1} parent=31 // pred_check
          %p234 = pneg %p233
        $region42: #{tpu_custom_call.1} parent=31 // pred_check_branch
          %236 = sbr.rel (%p234) target = $region44
        $region43: #{tpu_custom_call.1} parent=31 // pred_region
          %v237 = vld [vmem:[#allocation3] sm:$0xff]
          %v238 = vld [vmem:[#allocation3 + $0x8] sm:$0xff]
          %239 = vst [vmem:[#allocation2] sm:$0xff] %v237
          %240 = vst [vmem:[#allocation2 + $0x8] sm:$0xff] %v238
        $region44: #{tpu_custom_call.1} parent=31 // pred_fallthru
          _
        %v241 = vld [vmem:[#allocation2] sm:$0xff]
        %v242 = vld [vmem:[#allocation2 + $0x8] sm:$0xff]
        %v243 = vld [vmem:[%s207] sm:$0xff]
        %v244 = vld [vmem:[%s207 + $0x8] sm:$0xff]
        %v245 = vld [vmem:[%s207 + $0x10] sm:$0xff]
        %v246 = vld [vmem:[%s207 + $0x18] sm:$0xff]
        %v247 = vld [vmem:[%s207 + $0x20] sm:$0xff]
        %v248 = vld [vmem:[%s207 + $0x28] sm:$0xff]
        %v249 = vld [vmem:[%s207 + $0x30] sm:$0xff]
        %v250 = vld [vmem:[%s207 + $0x38] sm:$0xff]
        %v251 = vld [vmem:[%s207 + $0x40] sm:$0xff]
        %v252 = vld [vmem:[%s207 + $0x48] sm:$0xff]
        %v253 = vld [vmem:[%s207 + $0x50] sm:$0xff]
        %v254 = vld [vmem:[%s207 + $0x58] sm:$0xff]
        %v255 = vld [vmem:[%s207 + $0x60] sm:$0xff]
        %v256 = vld [vmem:[%s207 + $0x68] sm:$0xff]
        %v257 = vld [vmem:[%s207 + $0x70] sm:$0xff]
        %v258 = vld [vmem:[%s207 + $0x78] sm:$0xff]
        %v259 = vld [vmem:[%s231] sm:$0x1]
        %v261 = vlaneseq
        %v262 = vshrl.u32 %v261, 7
        %v263 = vsub.s32 0, %v262
        %v264 = vrot.slane %v259, %v263
        %266 = vmatprep.subr.mxu0 0.0
        %267 = vmatpush1.msra.mxu0 %v243
        %268 = vmatprep.subr.mxu0 0.0
        %269 = vmatpush1.msra.mxu0 %v244
        %270 = vmatprep.subr.mxu0 0.0
        %271 = vmatpush1.msra.mxu0 %v245
        %272 = vmatprep.subr.mxu0 0.0
        %273 = vmatpush1.msra.mxu0 %v246
        %274 = vmatprep.subr.mxu0 0.0
        %275 = vmatpush1.msra.mxu0 %v247
        %276 = vmatprep.subr.mxu0 0.0
        %277 = vmatpush1.msra.mxu0 %v248
        %278 = vmatprep.subr.mxu0 0.0
        %279 = vmatpush1.msra.mxu0 %v249
        %280 = vmatprep.subr.mxu0 0.0
        %281 = vmatpush1.msra.mxu0 %v250
        %282 = vmatprep.subr.mxu0 0.0
        %283 = vmatpush1.msra.mxu0 %v251
        %284 = vmatprep.subr.mxu0 0.0
        %285 = vmatpush1.msra.mxu0 %v252
        %286 = vmatprep.subr.mxu0 0.0
        %287 = vmatpush1.msra.mxu0 %v253
        %288 = vmatprep.subr.mxu0 0.0
        %289 = vmatpush1.msra.mxu0 %v254
        %290 = vmatprep.subr.mxu0 0.0
        %291 = vmatpush1.msra.mxu0 %v255
        %292 = vmatprep.subr.mxu0 0.0
        %293 = vmatpush1.msra.mxu0 %v256
        %294 = vmatprep.subr.mxu0 0.0
        %295 = vmatpush1.msra.mxu0 %v257
        %296 = vmatprep.subr.mxu0 0.0
        %297 = vmatpush1.msra.mxu0 %v258
        %298 = vmatprep.subr.mxu0 0.0
        %299 = vmatpush1.msra.mxu0 0.0
        %300 = vmatprep.subr.mxu0 0.0
        %301 = vmatpush1.msra.mxu0 0.0
        %302 = vmatprep.subr.mxu0 0.0
        %303 = vmatpush1.msra.mxu0 0.0
        %304 = vmatprep.subr.mxu0 0.0
        %305 = vmatpush1.msra.mxu0 0.0
        %306 = vmatprep.subr.mxu0 0.0
        %307 = vmatpush1.msra.mxu0 0.0
        %308 = vmatprep.subr.mxu0 0.0
        %309 = vmatpush1.msra.mxu0 0.0
        %310 = vmatprep.subr.mxu0 0.0
        %311 = vmatpush1.msra.mxu0 0.0
        %312 = vmatprep.subr.mxu0 0.0
        %313 = vmatpush1.msra.mxu0 0.0
        %314 = vmatprep.subr.mxu0 0.0
        %315 = vmatpush1.msra.mxu0 0.0
        %316 = vmatprep.subr.mxu0 0.0
        %317 = vmatpush1.msra.mxu0 0.0
        %318 = vmatprep.subr.mxu0 0.0
        %319 = vmatpush1.msra.mxu0 0.0
        %320 = vmatprep.subr.mxu0 0.0
        %321 = vmatpush1.msra.mxu0 0.0
        %322 = vmatprep.subr.mxu0 0.0
        %323 = vmatpush1.msra.mxu0 0.0
        %324 = vmatprep.subr.mxu0 0.0
        %325 = vmatpush1.msra.mxu0 0.0
        %326 = vmatprep.subr.mxu0 0.0
        %327 = vmatpush1.msra.mxu0 0.0
        %328 = vmatprep.subr.mxu0 0.0
        %329 = vmatpush1.msra.mxu0 0.0
        %330 = vmatprep.mubr.f32.mxu0 0.0
        %331 = vmatmul.mubr.f32.gmra.mrb[0].mxu0 %v241
        %v332 = vpop.f32.mrb[0].mxu0
        %v333 = vadd.f32 %v264, %v332
        %v334 = vpop.f32.mrb[0].mxu0
        %335 = vmatprep.mubr.f32.mxu0 0.0
        %336 = vmatmul.mubr.f32.gmra.mrb[0].mxu0 %v242
        %v337 = vpop.f32.mrb[0].mxu0
        %v338 = vadd.f32 %v264, %v337
        %v339 = vpop.f32.mrb[0].mxu0
        %340 = vdwg.mxu0
        %v341 = vmax.f32 %v333, 0.0
        %v342 = vmax.f32 %v338, 0.0
        %p343 = scmp.lt.s32.totalorder %s24, 2
        // Predicated region
        $region45: #{tpu_custom_call.1} parent=31 // pred_check
          %p344 = pneg %p343
        $region46: #{tpu_custom_call.1} parent=31 // pred_check_branch
          %346 = sbr.rel (%p344) target = $region48
        $region47: #{tpu_custom_call.1} parent=31 // pred_region
          %347 = vst [vmem:[#allocation2] sm:$0xff] %v341
          %348 = vst [vmem:[#allocation2 + $0x8] sm:$0xff] %v342
        $region48: #{tpu_custom_call.1} parent=31 // pred_fallthru
          _
        %p349 = scmp.eq.s32.totalorder %s24, 2
        // Predicated region
        $region49: #{tpu_custom_call.1} parent=31 // pred_check
          %p350 = pneg %p349
        $region50: #{tpu_custom_call.1} parent=31 // pred_check_branch
          %352 = sbr.rel (%p350) target = $region52
        $region51: #{tpu_custom_call.1} parent=31 // pred_region
          %353 = vst [vmem:[#allocation8] sm:$0xff] %v341
          %354 = vst [vmem:[#allocation8 + $0x8] sm:$0xff] %v342
        $region52: #{tpu_custom_call.1} parent=31 // pred_fallthru
          _
        // Predicated region
        $region53: #{tpu_custom_call.1} parent=31 // pred_check
          %p355 = pneg %p127
        $region54: #{tpu_custom_call.1} parent=31 // pred_check_branch
          %357 = sbr.rel (%p355) target = $region56
        $region55: #{tpu_custom_call.1} parent=31 // pred_region
          %s358 = smul.u32 2, %s23
          %s360 = ssub.s32 256, 256
          %361 = vsyncadd [#allocation5], %s360
          %s362 = smul.addr %s358, 128
          %s363 = scalar_lea.hbm %s3, %s362
          %s364 = sshll.u32 [#allocation8], 4
          %s365 = int_to_ptr.vmem [resolvable:$true] %s364
          %370 = dma.vmem_to_hbm [thread:$0]  %s365, 256, %s363, [#allocation5], 128, 128, 8
        $region56: #{tpu_custom_call.1} parent=31 // pred_fallthru
          _
        // Predicated region
        $region57: #{tpu_custom_call.1} parent=31 // pred_check
          %p371 = pneg %p127
        $region58: #{tpu_custom_call.1} parent=31 // pred_check_branch
          %373 = sbr.rel (%p371) target = $region60
        $region59: #{tpu_custom_call.1} parent=31 // pred_region
          %374 = dma.done [#allocation5], 256
        $region60: #{tpu_custom_call.1} parent=31 // pred_fallthru
          _
      $region32: #{tpu_custom_call.1} parent=5 // pred_fallthru
        _
      %p375 = scmp.le.s32.totalorder 2, %s14
      // Predicated region
      $region61: #{tpu_custom_call.1} parent=5 // pred_check
        %p376 = pneg %p375
      $region62: #{tpu_custom_call.1} parent=5 // pred_check_branch
        %378 = sbr.rel (%p376) target = $region64
      $region63: #{tpu_custom_call.1} parent=5 // pred_region
        %s379 = ssub.s32 %s14, 2
      $region64: #{tpu_custom_call.1} parent=5 // pred_fallthru
        _
    $region6: #{tpu_custom_call.1} parent=1 // loop_footer
      %s18 = sadd.s32 1, %s14
    $region7: #{tpu_custom_call.1} parent=1 // loop_footer_branch
      %13 = sbr.rel target = $region3
    $region8: #{tpu_custom_call.1} parent=1 // loop_exit
      _
    %380 = vsyncpa [#allocation4], 1
    %s381 = scalar_lea.sflag [#allocation4], 1
    %382 = vsyncpa %s381, 1
    %383 = vsyncpa [#allocation7], 1
    %s384 = scalar_lea.sflag [#allocation7], 1
    %385 = vsyncpa %s384, 1
    %386 = vsyncpa [#allocation5], 1
    %s387 = scalar_lea.sflag [#allocation5], 1
    %388 = vsyncpa %s387, 1

</llo_original>
